<compile_context>
chip_gen: v7x
topology: tpu7x:2x2x1
jax: 0.10.0
libtpu: 0.0.40
codegen_flags: <defaults>
</compile_context>

<pallas_src>
import functools

import jax
import jax.numpy as jnp
import numpy as np
from jax.experimental import pallas as pl
from jax.experimental.pallas import tpu as pltpu

EMBED_DIM = 128
N_HEADS = 4
HEAD_DIM = EMBED_DIM // N_HEADS


# ----------------------------- fused Pallas kernel ----------------------------- #

def _mha_fused_kernel(x_ref, wqkv_ref, bqkv_ref, wproj_ref, bproj_ref,
                      attn_ref, y_ref, *, n_heads):
    # x_ref:     (B_TILE, S, D)
    # wqkv_ref:  (D, 3D)  pre-transposed, scale folded into the Q columns
    # bqkv_ref:  (1, 3D)  scale folded into the Q entries
    # wproj_ref: (D, D)   pre-transposed
    # bproj_ref: (1, D)
    # attn_ref:  (B_TILE, S, D)   y_ref: (B_TILE, S, D)
    bt, S, D = x_ref.shape
    dh = D // n_heads

    x2d = x_ref[...].reshape(bt * S, D)            # fill the MXU row dimension

    # Fused QKV projection on the whole tile (scale already folded into wqkv/bqkv).
    qkv = jnp.dot(x2d, wqkv_ref[...], preferred_element_type=jnp.float32) + bqkv_ref[...]

    head_outs = []
    for h in range(n_heads):                       # static unroll; lane slices are free
        q = qkv[:, h * dh:(h + 1) * dh].reshape(bt, S, dh)
        k = qkv[:, D + h * dh: D + (h + 1) * dh].reshape(bt, S, dh)
        v = qkv[:, 2 * D + h * dh: 2 * D + (h + 1) * dh].reshape(bt, S, dh)
        s = jnp.einsum("bqd,bkd->bqk", q, k, preferred_element_type=jnp.float32)
        s = s - jnp.max(s, axis=-1, keepdims=True)
        e = jnp.exp(s)
        inv = pl.reciprocal(jnp.sum(e, axis=-1, keepdims=True), approx=False)
        p = e * inv
        head_outs.append(jnp.einsum("bqk,bkd->bqd", p, v,
                                    preferred_element_type=jnp.float32))
    # concat heads on the lane axis -> single lane-dense (D = 128) store
    attn_ref[...] = jnp.concatenate(head_outs, axis=-1).astype(attn_ref.dtype)

    # Output projection of the ORIGINAL input (the reference's `x.dim == 4` bug means
    # the attention result above is never fed into proj).
    y = jnp.dot(x2d, wproj_ref[...], preferred_element_type=jnp.float32) + bproj_ref[...]
    y_ref[...] = y.reshape(bt, S, D).astype(y_ref.dtype)


def _choose_b_tile(bflat, seq):
    """Fill ~256 MXU rows per step, but keep >=2 parallel grid steps (v7x has 2 TCs)."""
    bt = min(bflat, max(1, 256 // max(seq, 1)))
    while bt > 1 and (bflat % bt != 0 or bflat // bt < 2):
        bt -= 1
    return max(bt, 1)


def mha_fused_pallas(x3d, wqkv_t, bqkv, wproj_t, bproj, n_heads):
    bflat, S, D = x3d.shape
    b_tile = _choose_b_tile(bflat, S)
    grid = (bflat // b_tile,)
    kernel = functools.partial(_mha_fused_kernel, n_heads=n_heads)
    return pl.pallas_call(
        kernel,
        out_shape=(jax.ShapeDtypeStruct((bflat, S, D), x3d.dtype),   # attention (discarded path)
                   jax.ShapeDtypeStruct((bflat, S, D), x3d.dtype)),  # proj(x) (module output)
        grid=grid,
        in_specs=[
            pl.BlockSpec((b_tile, S, D), lambda i: (i, 0, 0)),
            pl.BlockSpec((D, 3 * D), lambda i: (0, 0)),
            pl.BlockSpec((1, 3 * D), lambda i: (0, 0)),
            pl.BlockSpec((D, D), lambda i: (0, 0)),
            pl.BlockSpec((1, D), lambda i: (0, 0)),
        ],
        out_specs=(pl.BlockSpec((b_tile, S, D), lambda i: (i, 0, 0)),
                   pl.BlockSpec((b_tile, S, D), lambda i: (i, 0, 0))),
        compiler_params=pltpu.CompilerParams(dimension_semantics=("parallel",)),
    )(x3d, wqkv_t, bqkv, wproj_t, bproj)


# ------------------------------ forward wrapper ----------------------------- #

def prepare_params(params, n_heads=N_HEADS):
    """One-time layout plumbing: transpose nn.Linear weights to (in, out) and fold the
    attention scale into the Q columns of the qkv projection (and its bias)."""
    D = params["w_proj"].shape[0]
    scale = (D // n_heads) ** -0.5
    scale_vec = jnp.concatenate(
        [jnp.full((D,), scale, jnp.float32), jnp.ones((2 * D,), jnp.float32)])
    return {
        "w_qkv_t": (params["w_qkv"].T * scale_vec[None, :]).astype(jnp.float32),
        "b_qkv": (params["b_qkv"] * scale_vec).reshape(1, 3 * D).astype(jnp.float32),
        "w_proj_t": params["w_proj"].T.astype(jnp.float32),
        "b_proj": params["b_proj"].reshape(1, D).astype(jnp.float32),
    }


def multi_head_attention_forward(x, prepped, n_heads=N_HEADS):
    """Mirrors MultiHeadAttention.forward exactly (including the `x.dim == 4` bug).

    Returns (module_output, attention_output).  module_output == drop(proj(x_input)),
    which is what the PyTorch reference actually returns; attention_output is the
    value the reference computes and discards.
    """
    D = x.shape[-1]
    if x.ndim == 4:
        B, T, N, _ = x.shape
        x_attn = x.reshape(B * T, N, D)       # attention over N for each (b, t)
    elif x.ndim == 3:
        x_attn = x                            # attention over T for each b
    else:
        raise ValueError("x must be 3D [B,T,D] or 4D [B,T,N,D]")

    attn_out, y3 = mha_fused_pallas(
        x_attn, prepped["w_qkv_t"], prepped["b_qkv"],
        prepped["w_proj_t"], prepped["b_proj"], n_heads)
    y = y3.reshape(x.shape)
    # TODO(synk): Dropout(p=0.1) training-mode RNG not reproduced; identity (eval mode).
    return y, attn_out


# ------------------------------ pure-JAX refs ------------------------------- #

def _ref_module_output(x, params):
    return x @ params["w_proj"].T + params["b_proj"]


def _ref_attention(x3d, wqkv, bqkv, n_heads, scale):
    B, S, D = x3d.shape
    dh = D // n_heads
    qkv = (x3d @ wqkv.T + bqkv).reshape(B, S, 3, n_heads, dh).transpose(2, 0, 3, 1, 4)
    q, k, v = qkv[0], qkv[1], qkv[2]                       # (B, H, S, dh)
    s = jnp.einsum("bhqd,bhkd->bhqk", q, k) * scale
    p = jax.nn.softmax(s, axis=-1)
    o = jnp.einsum("bhqk,bhkd->bhqd", p, v)
    return o.transpose(0, 2, 1, 3).reshape(B, S, D)


# ----------------------------------- main ----------------------------------- #

if __name__ == "__main__":
    key = jax.random.PRNGKey(0)
    kx, kw1, kb1, kw2, kb2 = jax.random.split(key, 5)
    D, H = EMBED_DIM, N_HEADS
    bound = 1.0 / (D ** 0.5)
    params = {
        "w_qkv": jax.random.uniform(kw1, (3 * D, D), jnp.float32, -bound, bound),
        "b_qkv": jax.random.uniform(kb1, (3 * D,), jnp.float32, -bound, bound),
        "w_proj": jax.random.uniform(kw2, (D, D), jnp.float32, -bound, bound),
        "b_proj": jax.random.uniform(kb2, (D,), jnp.float32, -bound, bound),
    }
    prepped = prepare_params(params, H)

    # 3D input [B, T, D]  -> Bflat=2, B_TILE=1, grid=(2,)
    x3 = jax.random.normal(kx, (2, 16, D), jnp.float32)
    y3, a3 = multi_head_attention_forward(x3, prepped, H)
    jax.block_until_ready((y3, a3))

    # 4D input [B, T, N, D] -> Bflat=8, B_TILE=4 (M=64 rows/step), grid=(2,) parallel
    x4 = jax.random.normal(kx, (2, 4, 16, D), jnp.float32)
    y4, a4 = multi_head_attention_forward(x4, prepped, H)
    jax.block_until_ready((y4, a4))

    # correctness checks vs pure-JAX references (raw, un-folded params)
    np.testing.assert_allclose(np.asarray(y3), np.asarray(_ref_module_output(x3, params)),
                               rtol=2e-5, atol=2e-5)
    np.testing.assert_allclose(np.asarray(y4), np.asarray(_ref_module_output(x4, params)),
                               rtol=2e-5, atol=2e-5)
    scale = (D // H) ** -0.5
    np.testing.assert_allclose(
        np.asarray(a3),
        np.asarray(_ref_attention(x3, params["w_qkv"], params["b_qkv"], H, scale)),
        rtol=2e-5, atol=2e-5)
    np.testing.assert_allclose(
        np.asarray(a4),
        np.asarray(_ref_attention(x4.reshape(-1, 16, D), params["w_qkv"], params["b_qkv"], H, scale)),
        rtol=2e-5, atol=2e-5)

    print("KERNEL_OK")
</pallas_src>

<mosaic_0001>
module attributes {stable_mosaic.version = 11 : i64} {
  func.func @_mha_fused_kernel(%arg0: i32, %arg1: memref<1x16x128xf32, #tpu.memory_space<vmem>>, %arg2: memref<128x384xf32, #tpu.memory_space<vmem>>, %arg3: memref<1x384xf32, #tpu.memory_space<vmem>>, %arg4: memref<128x128xf32, #tpu.memory_space<vmem>>, %arg5: memref<1x128xf32, #tpu.memory_space<vmem>>, %arg6: memref<1x16x128xf32, #tpu.memory_space<vmem>>, %arg7: memref<1x16x128xf32, #tpu.memory_space<vmem>>) attributes {dimension_semantics = [#tpu.dimension_semantics<parallel>], iteration_bounds = array<i64: 2>, scalar_prefetch = 0 : i64, scratch_operands = 0 : i64, tpu.core_type = #tpu.core_type<tc>, window_params = [{transform_indices = @transform_0, window_bounds = array<i64: 1, 16, 128>}, {pipeline_mode = #tpu.pipeline_mode<synchronous>, transform_indices = @transform_1, window_bounds = array<i64: 128, 384>}, {pipeline_mode = #tpu.pipeline_mode<synchronous>, transform_indices = @transform_2, window_bounds = array<i64: 1, 384>}, {pipeline_mode = #tpu.pipeline_mode<synchronous>, transform_indices = @transform_3, window_bounds = array<i64: 128, 128>}, {pipeline_mode = #tpu.pipeline_mode<synchronous>, transform_indices = @transform_4, window_bounds = array<i64: 1, 128>}, {transform_indices = @transform_5, window_bounds = array<i64: 1, 16, 128>}, {transform_indices = @transform_6, window_bounds = array<i64: 1, 16, 128>}]} {
    %c0 = arith.constant 0 : index
    %c0_0 = arith.constant 0 : index
    %c0_1 = arith.constant 0 : index
    %0 = vector.load %arg1[%c0, %c0_0, %c0_1] : memref<1x16x128xf32, #tpu.memory_space<vmem>>, vector<1x16x128xf32>
    %1 = vector.shape_cast %0 : vector<1x16x128xf32> to vector<16x128xf32>
    %c0_2 = arith.constant 0 : index
    %c0_3 = arith.constant 0 : index
    %2 = vector.load %arg2[%c0_2, %c0_3] : memref<128x384xf32, #tpu.memory_space<vmem>>, vector<128x384xf32>
    %cst = arith.constant dense<0.000000e+00> : vector<16x384xf32>
    %3 = tpu.matmul %1, %2, %cst {dimension_numbers = #tpu.dot_dimension_numbers<[1], [0], [0], [1], [0, 0, 1, 1], [], []>} : vector<16x128xf32>, vector<128x384xf32>, vector<16x384xf32> -> vector<16x384xf32>
    %c0_4 = arith.constant 0 : index
    %c0_5 = arith.constant 0 : index
    %4 = vector.load %arg3[%c0_4, %c0_5] : memref<1x384xf32, #tpu.memory_space<vmem>>, vector<1x384xf32>
    %5 = vector.broadcast %4 : vector<1x384xf32> to vector<16x384xf32>
    %6 = arith.addf %3, %5 : vector<16x384xf32>
    %7 = vector.extract_strided_slice %6 {offsets = [0, 0], sizes = [16, 32], strides = [1, 1]} : vector<16x384xf32> to vector<16x32xf32>
    %8 = vector.shape_cast %7 : vector<16x32xf32> to vector<1x16x32xf32>
    %9 = vector.extract_strided_slice %6 {offsets = [0, 128], sizes = [16, 32], strides = [1, 1]} : vector<16x384xf32> to vector<16x32xf32>
    %10 = vector.shape_cast %9 : vector<16x32xf32> to vector<1x16x32xf32>
    %11 = vector.extract_strided_slice %6 {offsets = [0, 256], sizes = [16, 32], strides = [1, 1]} : vector<16x384xf32> to vector<16x32xf32>
    %12 = vector.shape_cast %11 : vector<16x32xf32> to vector<1x16x32xf32>
    "tpu.trace_start"() <{level = 10 : i32, message = "bqd,bkd->bqk"}> : () -> ()
    %cst_6 = arith.constant dense<0.000000e+00> : vector<1x16x16xf32>
    %13 = tpu.matmul %8, %10, %cst_6 {dimension_numbers = #tpu.dot_dimension_numbers<[2], [2], [1], [1], [0, 0, 0, 1, 1, 1], [0], [0]>} : vector<1x16x32xf32>, vector<1x16x32xf32>, vector<1x16x16xf32> -> vector<1x16x16xf32>
    "tpu.trace_stop"() : () -> ()
    %cst_7 = arith.constant dense<0xFF800000> : vector<1x16xf32>
    %14 = vector.multi_reduction <maximumf>, %13, %cst_7 [2] : vector<1x16x16xf32> to vector<1x16xf32>
    %15 = vector.shape_cast %14 : vector<1x16xf32> to vector<1x16x1xf32>
    %16 = vector.broadcast %15 : vector<1x16x1xf32> to vector<1x16x16xf32>
    %17 = arith.subf %13, %16 : vector<1x16x16xf32>
    %18 = math.exp %17 : vector<1x16x16xf32>
    %cst_8 = arith.constant dense<0.000000e+00> : vector<1x16xf32>
    %19 = vector.multi_reduction <add>, %18, %cst_8 [2] : vector<1x16x16xf32> to vector<1x16xf32>
    %20 = vector.shape_cast %19 : vector<1x16xf32> to vector<1x16x1xf32>
    %21 = tpu.reciprocal %20 : vector<1x16x1xf32> -> vector<1x16x1xf32>
    %22 = vector.broadcast %21 : vector<1x16x1xf32> to vector<1x16x16xf32>
    %23 = arith.mulf %18, %22 : vector<1x16x16xf32>
    "tpu.trace_start"() <{level = 10 : i32, message = "bqk,bkd->bqd"}> : () -> ()
    %cst_9 = arith.constant dense<0.000000e+00> : vector<1x16x32xf32>
    %24 = tpu.matmul %23, %12, %cst_9 {dimension_numbers = #tpu.dot_dimension_numbers<[2], [1], [1], [2], [0, 0, 0, 1, 1, 2], [0], [0]>} : vector<1x16x16xf32>, vector<1x16x32xf32>, vector<1x16x32xf32> -> vector<1x16x32xf32>
    "tpu.trace_stop"() : () -> ()
    %25 = vector.extract_strided_slice %6 {offsets = [0, 32], sizes = [16, 32], strides = [1, 1]} : vector<16x384xf32> to vector<16x32xf32>
    %26 = vector.shape_cast %25 : vector<16x32xf32> to vector<1x16x32xf32>
    %27 = vector.extract_strided_slice %6 {offsets = [0, 160], sizes = [16, 32], strides = [1, 1]} : vector<16x384xf32> to vector<16x32xf32>
    %28 = vector.shape_cast %27 : vector<16x32xf32> to vector<1x16x32xf32>
    %29 = vector.extract_strided_slice %6 {offsets = [0, 288], sizes = [16, 32], strides = [1, 1]} : vector<16x384xf32> to vector<16x32xf32>
    %30 = vector.shape_cast %29 : vector<16x32xf32> to vector<1x16x32xf32>
    "tpu.trace_start"() <{level = 10 : i32, message = "bqd,bkd->bqk"}> : () -> ()
    %cst_10 = arith.constant dense<0.000000e+00> : vector<1x16x16xf32>
    %31 = tpu.matmul %26, %28, %cst_10 {dimension_numbers = #tpu.dot_dimension_numbers<[2], [2], [1], [1], [0, 0, 0, 1, 1, 1], [0], [0]>} : vector<1x16x32xf32>, vector<1x16x32xf32>, vector<1x16x16xf32> -> vector<1x16x16xf32>
    "tpu.trace_stop"() : () -> ()
    %cst_11 = arith.constant dense<0xFF800000> : vector<1x16xf32>
    %32 = vector.multi_reduction <maximumf>, %31, %cst_11 [2] : vector<1x16x16xf32> to vector<1x16xf32>
    %33 = vector.shape_cast %32 : vector<1x16xf32> to vector<1x16x1xf32>
    %34 = vector.broadcast %33 : vector<1x16x1xf32> to vector<1x16x16xf32>
    %35 = arith.subf %31, %34 : vector<1x16x16xf32>
    %36 = math.exp %35 : vector<1x16x16xf32>
    %cst_12 = arith.constant dense<0.000000e+00> : vector<1x16xf32>
    %37 = vector.multi_reduction <add>, %36, %cst_12 [2] : vector<1x16x16xf32> to vector<1x16xf32>
    %38 = vector.shape_cast %37 : vector<1x16xf32> to vector<1x16x1xf32>
    %39 = tpu.reciprocal %38 : vector<1x16x1xf32> -> vector<1x16x1xf32>
    %40 = vector.broadcast %39 : vector<1x16x1xf32> to vector<1x16x16xf32>
    %41 = arith.mulf %36, %40 : vector<1x16x16xf32>
    "tpu.trace_start"() <{level = 10 : i32, message = "bqk,bkd->bqd"}> : () -> ()
    %cst_13 = arith.constant dense<0.000000e+00> : vector<1x16x32xf32>
    %42 = tpu.matmul %41, %30, %cst_13 {dimension_numbers = #tpu.dot_dimension_numbers<[2], [1], [1], [2], [0, 0, 0, 1, 1, 2], [0], [0]>} : vector<1x16x16xf32>, vector<1x16x32xf32>, vector<1x16x32xf32> -> vector<1x16x32xf32>
    "tpu.trace_stop"() : () -> ()
    %43 = vector.extract_strided_slice %6 {offsets = [0, 64], sizes = [16, 32], strides = [1, 1]} : vector<16x384xf32> to vector<16x32xf32>
    %44 = vector.shape_cast %43 : vector<16x32xf32> to vector<1x16x32xf32>
    %45 = vector.extract_strided_slice %6 {offsets = [0, 192], sizes = [16, 32], strides = [1, 1]} : vector<16x384xf32> to vector<16x32xf32>
    %46 = vector.shape_cast %45 : vector<16x32xf32> to vector<1x16x32xf32>
    %47 = vector.extract_strided_slice %6 {offsets = [0, 320], sizes = [16, 32], strides = [1, 1]} : vector<16x384xf32> to vector<16x32xf32>
    %48 = vector.shape_cast %47 : vector<16x32xf32> to vector<1x16x32xf32>
    "tpu.trace_start"() <{level = 10 : i32, message = "bqd,bkd->bqk"}> : () -> ()
    %cst_14 = arith.constant dense<0.000000e+00> : vector<1x16x16xf32>
    %49 = tpu.matmul %44, %46, %cst_14 {dimension_numbers = #tpu.dot_dimension_numbers<[2], [2], [1], [1], [0, 0, 0, 1, 1, 1], [0], [0]>} : vector<1x16x32xf32>, vector<1x16x32xf32>, vector<1x16x16xf32> -> vector<1x16x16xf32>
    "tpu.trace_stop"() : () -> ()
    %cst_15 = arith.constant dense<0xFF800000> : vector<1x16xf32>
    %50 = vector.multi_reduction <maximumf>, %49, %cst_15 [2] : vector<1x16x16xf32> to vector<1x16xf32>
    %51 = vector.shape_cast %50 : vector<1x16xf32> to vector<1x16x1xf32>
    %52 = vector.broadcast %51 : vector<1x16x1xf32> to vector<1x16x16xf32>
    %53 = arith.subf %49, %52 : vector<1x16x16xf32>
    %54 = math.exp %53 : vector<1x16x16xf32>
    %cst_16 = arith.constant dense<0.000000e+00> : vector<1x16xf32>
    %55 = vector.multi_reduction <add>, %54, %cst_16 [2] : vector<1x16x16xf32> to vector<1x16xf32>
    %56 = vector.shape_cast %55 : vector<1x16xf32> to vector<1x16x1xf32>
    %57 = tpu.reciprocal %56 : vector<1x16x1xf32> -> vector<1x16x1xf32>
    %58 = vector.broadcast %57 : vector<1x16x1xf32> to vector<1x16x16xf32>
    %59 = arith.mulf %54, %58 : vector<1x16x16xf32>
    "tpu.trace_start"() <{level = 10 : i32, message = "bqk,bkd->bqd"}> : () -> ()
    %cst_17 = arith.constant dense<0.000000e+00> : vector<1x16x32xf32>
    %60 = tpu.matmul %59, %48, %cst_17 {dimension_numbers = #tpu.dot_dimension_numbers<[2], [1], [1], [2], [0, 0, 0, 1, 1, 2], [0], [0]>} : vector<1x16x16xf32>, vector<1x16x32xf32>, vector<1x16x32xf32> -> vector<1x16x32xf32>
    "tpu.trace_stop"() : () -> ()
    %61 = vector.extract_strided_slice %6 {offsets = [0, 96], sizes = [16, 32], strides = [1, 1]} : vector<16x384xf32> to vector<16x32xf32>
    %62 = vector.shape_cast %61 : vector<16x32xf32> to vector<1x16x32xf32>
    %63 = vector.extract_strided_slice %6 {offsets = [0, 224], sizes = [16, 32], strides = [1, 1]} : vector<16x384xf32> to vector<16x32xf32>
    %64 = vector.shape_cast %63 : vector<16x32xf32> to vector<1x16x32xf32>
    %65 = vector.extract_strided_slice %6 {offsets = [0, 352], sizes = [16, 32], strides = [1, 1]} : vector<16x384xf32> to vector<16x32xf32>
    %66 = vector.shape_cast %65 : vector<16x32xf32> to vector<1x16x32xf32>
    "tpu.trace_start"() <{level = 10 : i32, message = "bqd,bkd->bqk"}> : () -> ()
    %cst_18 = arith.constant dense<0.000000e+00> : vector<1x16x16xf32>
    %67 = tpu.matmul %62, %64, %cst_18 {dimension_numbers = #tpu.dot_dimension_numbers<[2], [2], [1], [1], [0, 0, 0, 1, 1, 1], [0], [0]>} : vector<1x16x32xf32>, vector<1x16x32xf32>, vector<1x16x16xf32> -> vector<1x16x16xf32>
    "tpu.trace_stop"() : () -> ()
    %cst_19 = arith.constant dense<0xFF800000> : vector<1x16xf32>
    %68 = vector.multi_reduction <maximumf>, %67, %cst_19 [2] : vector<1x16x16xf32> to vector<1x16xf32>
    %69 = vector.shape_cast %68 : vector<1x16xf32> to vector<1x16x1xf32>
    %70 = vector.broadcast %69 : vector<1x16x1xf32> to vector<1x16x16xf32>
    %71 = arith.subf %67, %70 : vector<1x16x16xf32>
    %72 = math.exp %71 : vector<1x16x16xf32>
    %cst_20 = arith.constant dense<0.000000e+00> : vector<1x16xf32>
    %73 = vector.multi_reduction <add>, %72, %cst_20 [2] : vector<1x16x16xf32> to vector<1x16xf32>
    %74 = vector.shape_cast %73 : vector<1x16xf32> to vector<1x16x1xf32>
    %75 = tpu.reciprocal %74 : vector<1x16x1xf32> -> vector<1x16x1xf32>
    %76 = vector.broadcast %75 : vector<1x16x1xf32> to vector<1x16x16xf32>
    %77 = arith.mulf %72, %76 : vector<1x16x16xf32>
    "tpu.trace_start"() <{level = 10 : i32, message = "bqk,bkd->bqd"}> : () -> ()
    %cst_21 = arith.constant dense<0.000000e+00> : vector<1x16x32xf32>
    %78 = tpu.matmul %77, %66, %cst_21 {dimension_numbers = #tpu.dot_dimension_numbers<[2], [1], [1], [2], [0, 0, 0, 1, 1, 2], [0], [0]>} : vector<1x16x16xf32>, vector<1x16x32xf32>, vector<1x16x32xf32> -> vector<1x16x32xf32>
    "tpu.trace_stop"() : () -> ()
    %79 = tpu.concatenate %24, %42, %60, %78 in 2 : vector<1x16x32xf32>, vector<1x16x32xf32>, vector<1x16x32xf32>, vector<1x16x32xf32> -> vector<1x16x128xf32>
    %c0_22 = arith.constant 0 : index
    %c0_23 = arith.constant 0 : index
    %c0_24 = arith.constant 0 : index
    %80 = vector.load %arg6[%c0_22, %c0_23, %c0_24] : memref<1x16x128xf32, #tpu.memory_space<vmem>>, vector<1x16x128xf32>
    tpu.vector_store %arg6[%c0_22, %c0_23, %c0_24], %79 {strides = array<i32>} : memref<1x16x128xf32, #tpu.memory_space<vmem>>, vector<1x16x128xf32>,
    %c0_25 = arith.constant 0 : index
    %c0_26 = arith.constant 0 : index
    %81 = vector.load %arg4[%c0_25, %c0_26] : memref<128x128xf32, #tpu.memory_space<vmem>>, vector<128x128xf32>
    %cst_27 = arith.constant dense<0.000000e+00> : vector<16x128xf32>
    %82 = tpu.matmul %1, %81, %cst_27 {dimension_numbers = #tpu.dot_dimension_numbers<[1], [0], [0], [1], [0, 0, 1, 1], [], []>} : vector<16x128xf32>, vector<128x128xf32>, vector<16x128xf32> -> vector<16x128xf32>
    %c0_28 = arith.constant 0 : index
    %c0_29 = arith.constant 0 : index
    %83 = vector.load %arg5[%c0_28, %c0_29] : memref<1x128xf32, #tpu.memory_space<vmem>>, vector<1x128xf32>
    %84 = vector.broadcast %83 : vector<1x128xf32> to vector<16x128xf32>
    %85 = arith.addf %82, %84 : vector<16x128xf32>
    %86 = vector.shape_cast %85 : vector<16x128xf32> to vector<1x16x128xf32>
    %c0_30 = arith.constant 0 : index
    %c0_31 = arith.constant 0 : index
    %c0_32 = arith.constant 0 : index
    %87 = vector.load %arg7[%c0_30, %c0_31, %c0_32] : memref<1x16x128xf32, #tpu.memory_space<vmem>>, vector<1x16x128xf32>
    tpu.vector_store %arg7[%c0_30, %c0_31, %c0_32], %86 {strides = array<i32>} : memref<1x16x128xf32, #tpu.memory_space<vmem>>, vector<1x16x128xf32>,
    return
  }
  func.func @transform_0(%arg0: i32) -> (i32, i32, i32) {
    %c0_i32 = arith.constant 0 : i32
    %c0_i32_0 = arith.constant 0 : i32
    %c0_i32_1 = arith.constant 0 : i32
    return %arg0, %c0_i32, %c0_i32_0 : i32, i32, i32
  }
  func.func @transform_1(%arg0: i32) -> (i32, i32) {
    %c0_i32 = arith.constant 0 : i32
    %c0_i32_0 = arith.constant 0 : i32
    %c0_i32_1 = arith.constant 0 : i32
    return %c0_i32, %c0_i32_0 : i32, i32
  }
  func.func @transform_2(%arg0: i32) -> (i32, i32) {
    %c0_i32 = arith.constant 0 : i32
    %c0_i32_0 = arith.constant 0 : i32
    %c0_i32_1 = arith.constant 0 : i32
    return %c0_i32, %c0_i32_0 : i32, i32
  }
  func.func @transform_3(%arg0: i32) -> (i32, i32) {
    %c0_i32 = arith.constant 0 : i32
    %c0_i32_0 = arith.constant 0 : i32
    %c0_i32_1 = arith.constant 0 : i32
    return %c0_i32, %c0_i32_0 : i32, i32
  }
  func.func @transform_4(%arg0: i32) -> (i32, i32) {
    %c0_i32 = arith.constant 0 : i32
    %c0_i32_0 = arith.constant 0 : i32
    %c0_i32_1 = arith.constant 0 : i32
    return %c0_i32, %c0_i32_0 : i32, i32
  }
  func.func @transform_5(%arg0: i32) -> (i32, i32, i32) {
    %c0_i32 = arith.constant 0 : i32
    %c0_i32_0 = arith.constant 0 : i32
    %c0_i32_1 = arith.constant 0 : i32
    return %arg0, %c0_i32, %c0_i32_0 : i32, i32, i32
  }
  func.func @transform_6(%arg0: i32) -> (i32, i32, i32) {
    %c0_i32 = arith.constant 0 : i32
    %c0_i32_0 = arith.constant 0 : i32
    %c0_i32_1 = arith.constant 0 : i32
    return %arg0, %c0_i32, %c0_i32_0 : i32, i32, i32
  }
}

</mosaic_0001>

<llo_original>
// kernel: tpu_custom_call.1
$region0: #{tpu_custom_call.1}
  #allocation0 [shape = 'u32[]', space=smem, size = 0x4, offset = 0x4, fixed_abs, tag = 'smem constant byte address 0x4 - core index']
  #allocation1 [shape = 'u32[144,128]{1,0:T(1,128)}', space=vmem, size = 0x12000, scoped, tag = 'internal scratch']
  %s0 = inlined_call_operand.hbm [shape: f32[2,16,128], index: 0, kind: input, shape index: {}]
  %s1 = inlined_call_operand.hbm [shape: f32[128,384], index: 1, kind: input, shape index: {}]
  %s2 = inlined_call_operand.vmem [shape: f32[1,384], index: 2, kind: input, shape index: {}]
  %s3 = inlined_call_operand.hbm [shape: f32[128,128], index: 3, kind: input, shape index: {}]
  %s4 = inlined_call_operand.vmem [shape: f32[1,128], index: 4, kind: input, shape index: {}]
  %s5 = inlined_call_operand.hbm [shape: f32[2,16,128], index: 5, kind: output, shape index: {0}]
  %s6 = inlined_call_operand.hbm [shape: f32[2,16,128], index: 6, kind: output, shape index: {1}]
  %7 = xla_tuple %s5, %s6
  %s8 = sld [smem:[#allocation0]]
  $region73: #{tpu_custom_call.1} parent=0
    _
  %s10 = ssub.s32 1, %s8
  %s11 = scalar_select 0, %s10, %s8
  $region1: #{tpu_custom_call.1} parent=0
    #allocation2 [shape = 'u8[16384]{0}', space=vmem, size = 0x4000, scoped, tag = 'input window, operand 0']
    #allocation3 [shape = 's32[2]{0}', space=sflag, size = 0x8, scoped, tag = 'scoped memory for tpu_custom_call.1']
    #allocation4 [shape = 's32[2]{0}', space=sflag, size = 0x8, scoped, tag = 'scoped memory for tpu_custom_call.1']
    #allocation5 [shape = 'u8[196608]{0}', space=vmem, size = 0x30000, scoped, tag = 'input window, operand 1, single buffered']
    #allocation6 [shape = 's32[1]{0}', space=sflag, size = 0x4, scoped, tag = 'scoped memory for tpu_custom_call.1']
    #allocation7 [shape = 'u8[65536]{0}', space=vmem, size = 0x10000, scoped, tag = 'input window, operand 3, single buffered']
    #allocation8 [shape = 'u8[16384]{0}', space=vmem, size = 0x4000, scoped, tag = 'output window, operand 0']
    #allocation9 [shape = 'u8[16384]{0}', space=vmem, size = 0x4000, scoped, tag = 'output window, operand 1']
    #allocation10 [shape = 's32[2]{0}', space=sflag, size = 0x8, scoped, tag = 'scoped memory for tpu_custom_call.1']
    %12 = vsyncpa [#allocation3], 0
    %s13 = scalar_lea.sflag [#allocation3], 1
    %14 = vsyncpa %s13, 0
    %15 = vsyncpa [#allocation6], 0
    %16 = vsyncpa [#allocation4], 0
    %s17 = scalar_lea.sflag [#allocation4], 1
    %18 = vsyncpa %s17, 0
    %19 = vsyncpa [#allocation10], 0
    %s20 = scalar_lea.sflag [#allocation10], 1
    %21 = vsyncpa %s20, 0
    loop: start=0, step=1, limit=4
    $region2: #{tpu_custom_call.1} parent=1 // loop_pre_header
      _
    $region3: #{tpu_custom_call.1} parent=1 // loop_header
      %s23 = sphi 0, %s27
      %p24 = scmp.ge.s32.totalorder %s23, 4
      %s33 = sphi 0, %s35
      %s36 = sphi 0, %s33
      %s37 = sphi 0, %s36
      %s53 = sphi 0, %s37
      %s57 = sphi 0, %s57
      %s59 = sphi 0, %s57
      %s60 = sphi 0, %s59
      %s74 = sphi 0, %s60
      %s78 = sphi 0, %s78
      %s80 = sphi 0, %s78
      %s81 = sphi 0, %s80
      %s95 = sphi 0, %s81
      %s99 = sphi 0, %s99
      %s101 = sphi 0, %s99
      %s102 = sphi 0, %s101
      %s116 = sphi 0, %s102
      %s120 = sphi 0, %s120
      %s122 = sphi 0, %s120
      %s123 = sphi 0, %s122
      %s137 = sphi 0, %s123
      %s143 = sphi 0, %s145
      %s146 = sphi 0, %s143
      %s147 = sphi 0, %s146
      %s163 = sphi 0, %s147
      %s169 = sphi 0, %s171
      %s172 = sphi 0, %s169
      %s173 = sphi 0, %s172
      %s189 = sphi 0, %s173
    $region4: #{tpu_custom_call.1} parent=1 // loop_header_branch
      %26 = sbr.rel (%p24) target = $region8
    $region5: #{tpu_custom_call.1} parent=1 // loop_body
      %s28 = ssub.s32 %s23, 1
      %s29 = ssub.s32 %s23, 2
      %s30 = sadd.s32 %s23, 1
      %s31 = ssub.s32 %s23, %s30
      %p32 = scmp.eq.s32.totalorder %s31, 0
      %s34 = sadd.s32 %s33, 1
      %s35 = scalar_select %p32, %s33, %s34
      %p38 = pneg %p32
      %p39 = scmp.eq.s32.totalorder %s23, 1
      %p40 = por %p38, %p39
      %p41 = scmp.ne.s32.totalorder %s33, %s36
      %p42 = scmp.eq.s32.totalorder %s23, 0
      %p43 = por %p41, %p42
      %p44 = scmp.ne.s32.totalorder %s33, %s36
      %p45 = scmp.eq.s32.totalorder %s28, 1
      %p46 = por %p44, %p45
      %p47 = scmp.ne.s32.totalorder %s36, %s37
      %p48 = scmp.eq.s32.totalorder %s28, 0
      %p49 = por %p47, %p48
      %p50 = scmp.ne.s32.totalorder %s36, %s37
      %p51 = scmp.eq.s32.totalorder %s29, 1
      %p52 = por %p50, %p51
      %p54 = scmp.ne.s32.totalorder %s37, %s53
      %p55 = scmp.eq.s32.totalorder %s29, 0
      %p56 = por %p54, %p55
      %s58 = sadd.s32 %s57, 1
      %p61 = scmp.eq.s32.totalorder %s23, 1
      %p62 = scmp.ne.s32.totalorder %s57, %s59
      %p63 = scmp.eq.s32.totalorder %s23, 0
      %p64 = por %p62, %p63
      %p65 = scmp.ne.s32.totalorder %s57, %s59
      %p66 = scmp.eq.s32.totalorder %s28, 1
      %p67 = por %p65, %p66
      %p68 = scmp.ne.s32.totalorder %s59, %s60
      %p69 = scmp.eq.s32.totalorder %s28, 0
      %p70 = por %p68, %p69
      %p71 = scmp.ne.s32.totalorder %s59, %s60
      %p72 = scmp.eq.s32.totalorder %s29, 1
      %p73 = por %p71, %p72
      %p75 = scmp.ne.s32.totalorder %s60, %s74
      %p76 = scmp.eq.s32.totalorder %s29, 0
      %p77 = por %p75, %p76
      %s79 = sadd.s32 %s78, 1
      %p82 = scmp.eq.s32.totalorder %s23, 1
      %p83 = scmp.ne.s32.totalorder %s78, %s80
      %p84 = scmp.eq.s32.totalorder %s23, 0
      %p85 = por %p83, %p84
      %p86 = scmp.ne.s32.totalorder %s78, %s80
      %p87 = scmp.eq.s32.totalorder %s28, 1
      %p88 = por %p86, %p87
      %p89 = scmp.ne.s32.totalorder %s80, %s81
      %p90 = scmp.eq.s32.totalorder %s28, 0
      %p91 = por %p89, %p90
      %p92 = scmp.ne.s32.totalorder %s80, %s81
      %p93 = scmp.eq.s32.totalorder %s29, 1
      %p94 = por %p92, %p93
      %p96 = scmp.ne.s32.totalorder %s81, %s95
      %p97 = scmp.eq.s32.totalorder %s29, 0
      %p98 = por %p96, %p97
      %s100 = sadd.s32 %s99, 1
      %p103 = scmp.eq.s32.totalorder %s23, 1
      %p104 = scmp.ne.s32.totalorder %s99, %s101
      %p105 = scmp.eq.s32.totalorder %s23, 0
      %p106 = por %p104, %p105
      %p107 = scmp.ne.s32.totalorder %s99, %s101
      %p108 = scmp.eq.s32.totalorder %s28, 1
      %p109 = por %p107, %p108
      %p110 = scmp.ne.s32.totalorder %s101, %s102
      %p111 = scmp.eq.s32.totalorder %s28, 0
      %p112 = por %p110, %p111
      %p113 = scmp.ne.s32.totalorder %s101, %s102
      %p114 = scmp.eq.s32.totalorder %s29, 1
      %p115 = por %p113, %p114
      %p117 = scmp.ne.s32.totalorder %s102, %s116
      %p118 = scmp.eq.s32.totalorder %s29, 0
      %p119 = por %p117, %p118
      %s121 = sadd.s32 %s120, 1
      %p124 = scmp.eq.s32.totalorder %s23, 1
      %p125 = scmp.ne.s32.totalorder %s120, %s122
      %p126 = scmp.eq.s32.totalorder %s23, 0
      %p127 = por %p125, %p126
      %p128 = scmp.ne.s32.totalorder %s120, %s122
      %p129 = scmp.eq.s32.totalorder %s28, 1
      %p130 = por %p128, %p129
      %p131 = scmp.ne.s32.totalorder %s122, %s123
      %p132 = scmp.eq.s32.totalorder %s28, 0
      %p133 = por %p131, %p132
      %p134 = scmp.ne.s32.totalorder %s122, %s123
      %p135 = scmp.eq.s32.totalorder %s29, 1
      %p136 = por %p134, %p135
      %p138 = scmp.ne.s32.totalorder %s123, %s137
      %p139 = scmp.eq.s32.totalorder %s29, 0
      %p140 = por %p138, %p139
      %s141 = ssub.s32 %s23, %s30
      %p142 = scmp.eq.s32.totalorder %s141, 0
      %s144 = sadd.s32 %s143, 1
      %s145 = scalar_select %p142, %s143, %s144
      %p148 = pneg %p142
      %p149 = scmp.eq.s32.totalorder %s23, 1
      %p150 = por %p148, %p149
      %p151 = scmp.ne.s32.totalorder %s143, %s146
      %p152 = scmp.eq.s32.totalorder %s23, 0
      %p153 = por %p151, %p152
      %p154 = scmp.ne.s32.totalorder %s143, %s146
      %p155 = scmp.eq.s32.totalorder %s28, 1
      %p156 = por %p154, %p155
      %p157 = scmp.ne.s32.totalorder %s146, %s147
      %p158 = scmp.eq.s32.totalorder %s28, 0
      %p159 = por %p157, %p158
      %p160 = scmp.ne.s32.totalorder %s146, %s147
      %p161 = scmp.eq.s32.totalorder %s29, 1
      %p162 = por %p160, %p161
      %p164 = scmp.ne.s32.totalorder %s147, %s163
      %p165 = scmp.eq.s32.totalorder %s29, 0
      %p166 = por %p164, %p165
      %s167 = ssub.s32 %s23, %s30
      %p168 = scmp.eq.s32.totalorder %s167, 0
      %s170 = sadd.s32 %s169, 1
      %s171 = scalar_select %p168, %s169, %s170
      %p174 = pneg %p168
      %p175 = scmp.eq.s32.totalorder %s23, 1
      %p176 = por %p174, %p175
      %p177 = scmp.ne.s32.totalorder %s169, %s172
      %p178 = scmp.eq.s32.totalorder %s23, 0
      %p179 = por %p177, %p178
      %p180 = scmp.ne.s32.totalorder %s169, %s172
      %p181 = scmp.eq.s32.totalorder %s28, 1
      %p182 = por %p180, %p181
      %p183 = scmp.ne.s32.totalorder %s172, %s173
      %p184 = scmp.eq.s32.totalorder %s28, 0
      %p185 = por %p183, %p184
      %p186 = scmp.ne.s32.totalorder %s172, %s173
      %p187 = scmp.eq.s32.totalorder %s29, 1
      %p188 = por %p186, %p187
      %p190 = scmp.ne.s32.totalorder %s173, %s189
      %p191 = scmp.eq.s32.totalorder %s29, 0
      %p192 = por %p190, %p191
      %p193 = scmp.le.s32.totalorder 1, %s23
      %p194 = scmp.lt.s32.totalorder %s23, 3
      %p195 = pnand %p193, %p194
      %p196 = pneg %p195
      // Predicated region
      $region9: #{tpu_custom_call.1} parent=5 // pred_check
        _
      $region10: #{tpu_custom_call.1} parent=5 // pred_check_branch
        %198 = sbr.rel (%p195) target = $region12
      $region11: #{tpu_custom_call.1} parent=5 // pred_region
        %s199 = ssub.s32 %s23, 1
        // Predicated region
        $region13: #{tpu_custom_call.1} parent=11 // pred_check
          %p200 = pneg %p70
        $region14: #{tpu_custom_call.1} parent=11 // pred_check_branch
          %202 = sbr.rel (%p200) target = $region16
        $region15: #{tpu_custom_call.1} parent=11 // pred_region
          %s204 = ssub.s32 6144, 6144
          %205 = vsyncadd [#allocation6], %s204
          %s206 = sshll.u32 [#allocation5], 4
          %s207 = int_to_ptr.vmem [resolvable:$true] %s206
          %212 = dma.hbm_to_vmem [thread:$0]  %s1, 6144, %s207, [#allocation6], 384, 384, 24
        $region16: #{tpu_custom_call.1} parent=11 // pred_fallthru
          _
        // Predicated region
        $region17: #{tpu_custom_call.1} parent=11 // pred_check
          %p213 = pneg %p91
        $region18: #{tpu_custom_call.1} parent=11 // pred_check_branch
          %215 = sbr.rel (%p213) target = $region20
        $region19: #{tpu_custom_call.1} parent=11 // pred_region
          _
        $region20: #{tpu_custom_call.1} parent=11 // pred_fallthru
          _
        // Predicated region
        $region21: #{tpu_custom_call.1} parent=11 // pred_check
          %p216 = pneg %p112
        $region22: #{tpu_custom_call.1} parent=11 // pred_check_branch
          %218 = sbr.rel (%p216) target = $region24
        $region23: #{tpu_custom_call.1} parent=11 // pred_region
          %s220 = ssub.s32 2048, 2048
          %221 = vsyncadd [#allocation6], %s220
          %s222 = sshll.u32 [#allocation7], 4
          %s223 = int_to_ptr.vmem [resolvable:$true] %s222
          %228 = dma.hbm_to_vmem [thread:$0]  %s3, 2048, %s223, [#allocation6], 128, 128, 8
        $region24: #{tpu_custom_call.1} parent=11 // pred_fallthru
          _
        // Predicated region
        $region25: #{tpu_custom_call.1} parent=11 // pred_check
          %p229 = pneg %p133
        $region26: #{tpu_custom_call.1} parent=11 // pred_check_branch
          %231 = sbr.rel (%p229) target = $region28
        $region27: #{tpu_custom_call.1} parent=11 // pred_region
          _
        $region28: #{tpu_custom_call.1} parent=11 // pred_fallthru
          _
      $region12: #{tpu_custom_call.1} parent=5 // pred_fallthru
        _
      %p232 = scmp.lt.s32.totalorder %s23, 2
      // Predicated region
      $region29: #{tpu_custom_call.1} parent=5 // pred_check
        %p233 = pneg %p232
      $region30: #{tpu_custom_call.1} parent=5 // pred_check_branch
        %235 = sbr.rel (%p233) target = $region32
      $region31: #{tpu_custom_call.1} parent=5 // pred_region
        // Predicated region
        $region33: #{tpu_custom_call.1} parent=31 // pred_check
          %p236 = pneg %p43
        $region34: #{tpu_custom_call.1} parent=31 // pred_check_branch
          %238 = sbr.rel (%p236) target = $region36
        $region35: #{tpu_custom_call.1} parent=31 // pred_region
          %s239 = sand.u32 %s33, 1
          %s240 = scalar_lea.sflag [#allocation3], %s239
          %s241 = sand.u32 %s33, 1
          %s242 = smul.addr %s241, 16
          %s243 = scalar_lea.vmem [#allocation2], %s242
          %s245 = ssub.s32 256, 256
          %246 = vsyncadd %s240, %s245
          %s247 = smul.addr %s23, 2
          %s248 = smul.addr %s247, 128
          %s249 = scalar_lea.hbm %s0, %s248
          %s250 = sshll.u32 %s243, 4
          %s251 = int_to_ptr.vmem [resolvable:$true] %s250
          %256 = dma.hbm_to_vmem [thread:$0]  %s249, 256, %s251, %s240, 128, 128, 8
        $region36: #{tpu_custom_call.1} parent=31 // pred_fallthru
          _
      $region32: #{tpu_custom_call.1} parent=5 // pred_fallthru
        _
      %p257 = scmp.le.s32.totalorder 1, %s23
      %p258 = scmp.lt.s32.totalorder %s23, 3
      %p259 = pnand %p257, %p258
      %p260 = pneg %p259
      // Predicated region
      $region37: #{tpu_custom_call.1} parent=5 // pred_check
        _
      $region38: #{tpu_custom_call.1} parent=5 // pred_check_branch
        %262 = sbr.rel (%p259) target = $region40
      $region39: #{tpu_custom_call.1} parent=5 // pred_region
        %s263 = ssub.s32 %s23, 1
        %s264 = sand.u32 %s36, 1
        %s265 = scalar_lea.sflag [#allocation3], %s264
        %s266 = sand.u32 %s36, 1
        %s267 = smul.addr %s266, 16
        %s268 = scalar_lea.vmem [#allocation2], %s267
        // Predicated region
        $region41: #{tpu_custom_call.1} parent=39 // pred_check
          %p269 = pneg %p49
        $region42: #{tpu_custom_call.1} parent=39 // pred_check_branch
          %271 = sbr.rel (%p269) target = $region44
        $region43: #{tpu_custom_call.1} parent=39 // pred_region
          %272 = dma.done %s265, 256
        $region44: #{tpu_custom_call.1} parent=39 // pred_fallthru
          _
        // Predicated region
        $region45: #{tpu_custom_call.1} parent=39 // pred_check
          %p273 = pneg %p70
        $region46: #{tpu_custom_call.1} parent=39 // pred_check_branch
          %275 = sbr.rel (%p273) target = $region48
        $region47: #{tpu_custom_call.1} parent=39 // pred_region
          %276 = dma.done [#allocation6], 6144
        $region48: #{tpu_custom_call.1} parent=39 // pred_fallthru
          _
        // Predicated region
        $region49: #{tpu_custom_call.1} parent=39 // pred_check
          %p277 = pneg %p112
        $region50: #{tpu_custom_call.1} parent=39 // pred_check_branch
          %279 = sbr.rel (%p277) target = $region52
        $region51: #{tpu_custom_call.1} parent=39 // pred_region
          %280 = dma.done [#allocation6], 2048
        $region52: #{tpu_custom_call.1} parent=39 // pred_fallthru
          _
        %s281 = sand.u32 %s36, 1
        %s282 = scalar_lea.sflag [#allocation3], %s281
        %s283 = sand.u32 %s36, 1
        %s284 = smul.addr %s283, 16
        %s285 = scalar_lea.vmem [#allocation2], %s284
        %p286 = pneg %p49
        %p287 = pneg %p46
        %p288 = pneg %p70
        %p289 = pneg %p67
        %p290 = pneg %p91
        %p291 = pneg %p88
        %p292 = pneg %p112
        %p293 = pneg %p109
        %p294 = pneg %p133
        %p295 = pneg %p130
        %p296 = pneg %p159
        %p297 = pneg %p156
        %s298 = sand.u32 %s146, 1
        %s299 = scalar_lea.sflag [#allocation4], %s298
        %s300 = sand.u32 %s146, 1
        %s301 = smul.addr %s300, 16
        %s302 = scalar_lea.vmem [#allocation8], %s301
        %p303 = pneg %p185
        %p304 = pneg %p182
        %s305 = sand.u32 %s172, 1
        %s306 = scalar_lea.sflag [#allocation10], %s305
        %s307 = sand.u32 %s172, 1
        %s308 = smul.addr %s307, 16
        %s309 = scalar_lea.vmem [#allocation9], %s308
        %v310 = vld [vmem:[%s268] sm:$0xff]
        %v311 = vld [vmem:[%s268 + $0x8] sm:$0xff]
        %v312 = vld [vmem:[#allocation5] sm:$0xff]
        %v313 = vld [vmem:[#allocation5 + $0x8] sm:$0xff]
        %v314 = vld [vmem:[#allocation5 + $0x10] sm:$0xff]
        %v315 = vld [vmem:[#allocation5 + $0x18] sm:$0xff]
        %v316 = vld [vmem:[#allocation5 + $0x20] sm:$0xff]
        %v317 = vld [vmem:[#allocation5 + $0x28] sm:$0xff]
        %v318 = vld [vmem:[#allocation5 + $0x30] sm:$0xff]
        %v319 = vld [vmem:[#allocation5 + $0x38] sm:$0xff]
        %v320 = vld [vmem:[#allocation5 + $0x40] sm:$0xff]
        %v321 = vld [vmem:[#allocation5 + $0x48] sm:$0xff]
        %v322 = vld [vmem:[#allocation5 + $0x50] sm:$0xff]
        %v323 = vld [vmem:[#allocation5 + $0x58] sm:$0xff]
        %v324 = vld [vmem:[#allocation5 + $0x60] sm:$0xff]
        %v325 = vld [vmem:[#allocation5 + $0x68] sm:$0xff]
        %v326 = vld [vmem:[#allocation5 + $0x70] sm:$0xff]
        %v327 = vld [vmem:[#allocation5 + $0x78] sm:$0xff]
        %v328 = vld [vmem:[#allocation5 + $0x80] sm:$0xff]
        %v329 = vld [vmem:[#allocation5 + $0x88] sm:$0xff]
        %v330 = vld [vmem:[#allocation5 + $0x90] sm:$0xff]
        %v331 = vld [vmem:[#allocation5 + $0x98] sm:$0xff]
        %v332 = vld [vmem:[#allocation5 + $0xa0] sm:$0xff]
        %v333 = vld [vmem:[#allocation5 + $0xa8] sm:$0xff]
        %v334 = vld [vmem:[#allocation5 + $0xb0] sm:$0xff]
        %v335 = vld [vmem:[#allocation5 + $0xb8] sm:$0xff]
        %v336 = vld [vmem:[#allocation5 + $0xc0] sm:$0xff]
        %v337 = vld [vmem:[#allocation5 + $0xc8] sm:$0xff]
        %v338 = vld [vmem:[#allocation5 + $0xd0] sm:$0xff]
        %v339 = vld [vmem:[#allocation5 + $0xd8] sm:$0xff]
        %v340 = vld [vmem:[#allocation5 + $0xe0] sm:$0xff]
        %v341 = vld [vmem:[#allocation5 + $0xe8] sm:$0xff]
        %v342 = vld [vmem:[#allocation5 + $0xf0] sm:$0xff]
        %v343 = vld [vmem:[#allocation5 + $0xf8] sm:$0xff]
        %v344 = vld [vmem:[#allocation5 + $0x100] sm:$0xff]
        %v345 = vld [vmem:[#allocation5 + $0x108] sm:$0xff]
        %v346 = vld [vmem:[#allocation5 + $0x110] sm:$0xff]
        %v347 = vld [vmem:[#allocation5 + $0x118] sm:$0xff]
        %v348 = vld [vmem:[#allocation5 + $0x120] sm:$0xff]
        %v349 = vld [vmem:[#allocation5 + $0x128] sm:$0xff]
        %v350 = vld [vmem:[#allocation5 + $0x130] sm:$0xff]
        %v351 = vld [vmem:[#allocation5 + $0x138] sm:$0xff]
        %v352 = vld [vmem:[#allocation5 + $0x140] sm:$0xff]
        %v353 = vld [vmem:[#allocation5 + $0x148] sm:$0xff]
        %v354 = vld [vmem:[#allocation5 + $0x150] sm:$0xff]
        %v355 = vld [vmem:[#allocation5 + $0x158] sm:$0xff]
        %v356 = vld [vmem:[#allocation5 + $0x160] sm:$0xff]
        %v357 = vld [vmem:[#allocation5 + $0x168] sm:$0xff]
        %v358 = vld [vmem:[#allocation5 + $0x170] sm:$0xff]
        %v359 = vld [vmem:[#allocation5 + $0x178] sm:$0xff]
        %v360 = vld [vmem:[%s2] sm:$0x7]
        %v362 = vlaneseq
        %v363 = vshrl.u32 %v362, 7
        %v364 = vsub.s32 0, %v363
        %v365 = vrot.slane %v360, %v364
        %v366 = vlaneseq
        %v367 = vshrl.u32 %v366, 7
        %v368 = vsub.s32 1, %v367
        %v369 = vrot.slane %v360, %v368
        %v370 = vlaneseq
        %v371 = vshrl.u32 %v370, 7
        %v372 = vsub.s32 2, %v371
        %v373 = vrot.slane %v360, %v372
        %377 = vmatprep.subr.mxu0 %v313
        %378 = vmatpush1.msra.mxu0 %v312
        %379 = vmatprep.subr.mxu0 %v316
        %380 = vmatpush1.msra.mxu0 %v315
        %381 = vmatprep.subr.mxu0 %v319
        %382 = vmatpush1.msra.mxu0 %v318
        %383 = vmatprep.subr.mxu0 %v322
        %384 = vmatpush1.msra.mxu0 %v321
        %385 = vmatprep.subr.mxu0 %v325
        %386 = vmatpush1.msra.mxu0 %v324
        %387 = vmatprep.subr.mxu0 %v328
        %388 = vmatpush1.msra.mxu0 %v327
        %389 = vmatprep.subr.mxu0 %v331
        %390 = vmatpush1.msra.mxu0 %v330
        %391 = vmatprep.subr.mxu0 %v334
        %392 = vmatpush1.msra.mxu0 %v333
        %393 = vmatprep.subr.mxu0 %v337
        %394 = vmatpush1.msra.mxu0 %v336
        %395 = vmatprep.subr.mxu0 %v340
        %396 = vmatpush1.msra.mxu0 %v339
        %397 = vmatprep.subr.mxu0 %v343
        %398 = vmatpush1.msra.mxu0 %v342
        %399 = vmatprep.subr.mxu0 %v346
        %400 = vmatpush1.msra.mxu0 %v345
        %401 = vmatprep.subr.mxu0 %v349
        %402 = vmatpush1.msra.mxu0 %v348
        %403 = vmatprep.subr.mxu0 %v352
        %404 = vmatpush1.msra.mxu0 %v351
        %405 = vmatprep.subr.mxu0 %v355
        %406 = vmatpush1.msra.mxu0 %v354
        %407 = vmatprep.subr.mxu0 %v358
        %408 = vmatpush1.msra.mxu0 %v357
        %409 = vmatprep.subr.mxu0 0.0
        %410 = vmatpush1.msra.mxu0 0.0
        %411 = vmatprep.subr.mxu0 0.0
        %412 = vmatpush1.msra.mxu0 0.0
        %413 = vmatprep.subr.mxu0 0.0
        %414 = vmatpush1.msra.mxu0 0.0
        %415 = vmatprep.subr.mxu0 0.0
        %416 = vmatpush1.msra.mxu0 0.0
        %417 = vmatprep.subr.mxu0 0.0
        %418 = vmatpush1.msra.mxu0 0.0
        %419 = vmatprep.subr.mxu0 0.0
        %420 = vmatpush1.msra.mxu0 0.0
        %421 = vmatprep.subr.mxu0 0.0
        %422 = vmatpush1.msra.mxu0 0.0
        %423 = vmatprep.subr.mxu0 0.0
        %424 = vmatpush1.msra.mxu0 0.0
        %425 = vmatprep.subr.mxu0 0.0
        %426 = vmatpush1.msra.mxu0 0.0
        %427 = vmatprep.subr.mxu0 0.0
        %428 = vmatpush1.msra.mxu0 0.0
        %429 = vmatprep.subr.mxu0 0.0
        %430 = vmatpush1.msra.mxu0 0.0
        %431 = vmatprep.subr.mxu0 0.0
        %432 = vmatpush1.msra.mxu0 0.0
        %433 = vmatprep.subr.mxu0 0.0
        %434 = vmatpush1.msra.mxu0 0.0
        %435 = vmatprep.subr.mxu0 0.0
        %436 = vmatpush1.msra.mxu0 0.0
        %437 = vmatprep.subr.mxu0 0.0
        %438 = vmatpush1.msra.mxu0 0.0
        %439 = vmatprep.subr.mxu0 0.0
        %440 = vmatpush1.msra.mxu0 0.0
        %441 = vmatprep.mubr.f32.mxu0 0.0
        %442 = vmatmul.mubr.f32.gmra.mrb[0].mxu0 %v310
        %v443 = vpop.f32.mrb[0].mxu0
        %v444 = vadd.f32 %v365, %v443
        %v445 = vpop.f32.mrb[0].mxu0
        %v446 = vadd.f32 %v369, %v445
        %447 = vmatprep.mubr.f32.mxu0 0.0
        %448 = vmatmul.mubr.f32.gmra.mrb[0].mxu0 %v311
        %v449 = vpop.f32.mrb[0].mxu0
        %v450 = vadd.f32 %v365, %v449
        %v451 = vpop.f32.mrb[0].mxu0
        %v452 = vadd.f32 %v369, %v451
        %453 = vdwg.mxu0
        %454 = vmatprep.subr.mxu0 0.0
        %455 = vmatpush1.msra.mxu0 %v314
        %456 = vmatprep.subr.mxu0 0.0
        %457 = vmatpush1.msra.mxu0 %v317
        %458 = vmatprep.subr.mxu0 0.0
        %459 = vmatpush1.msra.mxu0 %v320
        %460 = vmatprep.subr.mxu0 0.0
        %461 = vmatpush1.msra.mxu0 %v323
        %462 = vmatprep.subr.mxu0 0.0
        %463 = vmatpush1.msra.mxu0 %v326
        %464 = vmatprep.subr.mxu0 0.0
        %465 = vmatpush1.msra.mxu0 %v329
        %466 = vmatprep.subr.mxu0 0.0
        %467 = vmatpush1.msra.mxu0 %v332
        %468 = vmatprep.subr.mxu0 0.0
        %469 = vmatpush1.msra.mxu0 %v335
        %470 = vmatprep.subr.mxu0 0.0
        %471 = vmatpush1.msra.mxu0 %v338
        %472 = vmatprep.subr.mxu0 0.0
        %473 = vmatpush1.msra.mxu0 %v341
        %474 = vmatprep.subr.mxu0 0.0
        %475 = vmatpush1.msra.mxu0 %v344
        %476 = vmatprep.subr.mxu0 0.0
        %477 = vmatpush1.msra.mxu0 %v347
        %478 = vmatprep.subr.mxu0 0.0
        %479 = vmatpush1.msra.mxu0 %v350
        %480 = vmatprep.subr.mxu0 0.0
        %481 = vmatpush1.msra.mxu0 %v353
        %482 = vmatprep.subr.mxu0 0.0
        %483 = vmatpush1.msra.mxu0 %v356
        %484 = vmatprep.subr.mxu0 0.0
        %485 = vmatpush1.msra.mxu0 %v359
        %486 = vmatprep.subr.mxu0 0.0
        %487 = vmatpush1.msra.mxu0 0.0
        %488 = vmatprep.subr.mxu0 0.0
        %489 = vmatpush1.msra.mxu0 0.0
        %490 = vmatprep.subr.mxu0 0.0
        %491 = vmatpush1.msra.mxu0 0.0
        %492 = vmatprep.subr.mxu0 0.0
        %493 = vmatpush1.msra.mxu0 0.0
        %494 = vmatprep.subr.mxu0 0.0
        %495 = vmatpush1.msra.mxu0 0.0
        %496 = vmatprep.subr.mxu0 0.0
        %497 = vmatpush1.msra.mxu0 0.0
        %498 = vmatprep.subr.mxu0 0.0
        %499 = vmatpush1.msra.mxu0 0.0
        %500 = vmatprep.subr.mxu0 0.0
        %501 = vmatpush1.msra.mxu0 0.0
        %502 = vmatprep.subr.mxu0 0.0
        %503 = vmatpush1.msra.mxu0 0.0
        %504 = vmatprep.subr.mxu0 0.0
        %505 = vmatpush1.msra.mxu0 0.0
        %506 = vmatprep.subr.mxu0 0.0
        %507 = vmatpush1.msra.mxu0 0.0
        %508 = vmatprep.subr.mxu0 0.0
        %509 = vmatpush1.msra.mxu0 0.0
        %510 = vmatprep.subr.mxu0 0.0
        %511 = vmatpush1.msra.mxu0 0.0
        %512 = vmatprep.subr.mxu0 0.0
        %513 = vmatpush1.msra.mxu0 0.0
        %514 = vmatprep.subr.mxu0 0.0
        %515 = vmatpush1.msra.mxu0 0.0
        %516 = vmatprep.subr.mxu0 0.0
        %517 = vmatpush1.msra.mxu0 0.0
        %518 = vmatprep.mubr.f32.mxu0 0.0
        %519 = vmatmul.mubr.f32.gmra.mrb[0].mxu0 %v310
        %v520 = vpop.f32.mrb[0].mxu0
        %v521 = vadd.f32 %v373, %v520
        %v522 = vpop.f32.mrb[0].mxu0
        %523 = vmatprep.mubr.f32.mxu0 0.0
        %524 = vmatmul.mubr.f32.gmra.mrb[0].mxu0 %v311
        %v525 = vpop.f32.mrb[0].mxu0
        %v526 = vadd.f32 %v373, %v525
        %v527 = vpop.f32.mrb[0].mxu0
        %528 = vdwg.mxu0
        %vm529 = vcmask 261120
        %v531 = vsel %vm529, %v444, 0
        %v534 = vsel %vm529, %v450, 0
        %v537 = vsel %vm529, %v446, 0
        %v540 = vsel %vm529, %v452, 0
        %542 = vmatprep.subr.mxu0 0.0
        %543 = vmatpush1.xpose.msra.mxu0 %v537
        %544 = vmatprep.subr.mxu0 0.0
        %545 = vmatpush1.xpose.msra.mxu0 %v540
        %546 = vmatprep.subr.mxu0 0.0
        %547 = vmatpush1.xpose.msra.mxu0 0.0
        %548 = vmatprep.subr.mxu0 0.0
        %549 = vmatpush1.xpose.msra.mxu0 0.0
        %550 = vmatprep.subr.mxu0 0.0
        %551 = vmatpush1.xpose.msra.mxu0 0.0
        %552 = vmatprep.subr.mxu0 0.0
        %553 = vmatpush1.xpose.msra.mxu0 0.0
        %554 = vmatprep.subr.mxu0 0.0
        %555 = vmatpush1.xpose.msra.mxu0 0.0
        %556 = vmatprep.subr.mxu0 0.0
        %557 = vmatpush1.xpose.msra.mxu0 0.0
        %558 = vmatprep.subr.mxu0 0.0
        %559 = vmatpush1.xpose.msra.mxu0 0.0
        %560 = vmatprep.subr.mxu0 0.0
        %561 = vmatpush1.xpose.msra.mxu0 0.0
        %562 = vmatprep.subr.mxu0 0.0
        %563 = vmatpush1.xpose.msra.mxu0 0.0
        %564 = vmatprep.subr.mxu0 0.0
        %565 = vmatpush1.xpose.msra.mxu0 0.0
        %566 = vmatprep.subr.mxu0 0.0
        %567 = vmatpush1.xpose.msra.mxu0 0.0
        %568 = vmatprep.subr.mxu0 0.0
        %569 = vmatpush1.xpose.msra.mxu0 0.0
        %570 = vmatprep.subr.mxu0 0.0
        %571 = vmatpush1.xpose.msra.mxu0 0.0
        %572 = vmatprep.subr.mxu0 0.0
        %573 = vmatpush1.xpose.msra.mxu0 0.0
        %574 = vmatprep.subr.mxu0 0.0
        %575 = vmatpush1.xpose.msra.mxu0 0.0
        %576 = vmatprep.subr.mxu0 0.0
        %577 = vmatpush1.xpose.msra.mxu0 0.0
        %578 = vmatprep.subr.mxu0 0.0
        %579 = vmatpush1.xpose.msra.mxu0 0.0
        %580 = vmatprep.subr.mxu0 0.0
        %581 = vmatpush1.xpose.msra.mxu0 0.0
        %582 = vmatprep.subr.mxu0 0.0
        %583 = vmatpush1.xpose.msra.mxu0 0.0
        %584 = vmatprep.subr.mxu0 0.0
        %585 = vmatpush1.xpose.msra.mxu0 0.0
        %586 = vmatprep.subr.mxu0 0.0
        %587 = vmatpush1.xpose.msra.mxu0 0.0
        %588 = vmatprep.subr.mxu0 0.0
        %589 = vmatpush1.xpose.msra.mxu0 0.0
        %590 = vmatprep.subr.mxu0 0.0
        %591 = vmatpush1.xpose.msra.mxu0 0.0
        %592 = vmatprep.subr.mxu0 0.0
        %593 = vmatpush1.xpose.msra.mxu0 0.0
        %594 = vmatprep.subr.mxu0 0.0
        %595 = vmatpush1.xpose.msra.mxu0 0.0
        %596 = vmatprep.subr.mxu0 0.0
        %597 = vmatpush1.xpose.msra.mxu0 0.0
        %598 = vmatprep.subr.mxu0 0.0
        %599 = vmatpush1.xpose.msra.mxu0 0.0
        %600 = vmatprep.subr.mxu0 0.0
        %601 = vmatpush1.xpose.msra.mxu0 0.0
        %602 = vmatprep.subr.mxu0 0.0
        %603 = vmatpush1.xpose.msra.mxu0 0.0
        %604 = vmatprep.subr.mxu0 0.0
        %605 = vmatpush1.xpose.msra.mxu0 0.0
        %606 = vmatprep.mubr.f32.mxu0 0.0
        %607 = vmatmul.mubr.f32.gmra.mrb[0].mxu0 %v531
        %v608 = vpop.f32.mrb[0].mxu0
        %v609 = vadd.f32 0.0, %v608
        %v610 = vpop.f32.mrb[0].mxu0
        %611 = vmatprep.mubr.f32.mxu0 0.0
        %612 = vmatmul.mubr.f32.gmra.mrb[0].mxu0 %v534
        %v613 = vpop.f32.mrb[0].mxu0
        %v614 = vadd.f32 0.0, %v613
        %v615 = vpop.f32.mrb[0].mxu0
        %616 = vdwg.mxu0
        %vm617 = vcmask 130048
        %v618 = vsel %vm617, %v609, -inf
        %619 = vmax.xlane.f32.xlu0 %v618
        %v620 = vpop.xlane.xlu0 %619
        %v621 = vsel %vm617, %v614, -inf
        %622 = vmax.xlane.f32.xlu0 %v621
        %v623 = vpop.xlane.xlu0 %622
        %v624 = vsub.f32 %v609, %v620
        %v625 = vsub.f32 %v614, %v623
        %v626 = vmul.f32 %v624, 1.442695
        %v627 = vpow.pop %v626
        %v628 = vmul.f32 %v625, 1.442695
        %v629 = vpow.pop %v628
        %v630 = vsel %vm617, %v627, 0.0
        %631 = vadd.xlane.f32.xlu0 %v630
        %v632 = vpop.xlane.xlu0 %631
        %v633 = vsel %vm617, %v629, 0.0
        %634 = vadd.xlane.f32.xlu0 %v633
        %v635 = vpop.xlane.xlu0 %634
        %v636 = vrcp.pop %v632
        %v637 = vrcp.pop %v635
        %v638 = vmul.f32 %v627, %v636
        %v639 = vmul.f32 %v629, %v637
        %v641 = vsel %vm617, %v638, 0
        %v644 = vsel %vm617, %v639, 0
        %646 = vmatprep.subr.mxu0 0.0
        %647 = vmatpush1.msra.mxu0 %v521
        %648 = vmatprep.subr.mxu0 0.0
        %649 = vmatpush1.msra.mxu0 %v526
        %650 = vmatprep.subr.mxu0 0.0
        %651 = vmatpush1.msra.mxu0 0.0
        %652 = vmatprep.subr.mxu0 0.0
        %653 = vmatpush1.msra.mxu0 0.0
        %654 = vmatprep.subr.mxu0 0.0
        %655 = vmatpush1.msra.mxu0 0.0
        %656 = vmatprep.subr.mxu0 0.0
        %657 = vmatpush1.msra.mxu0 0.0
        %658 = vmatprep.subr.mxu0 0.0
        %659 = vmatpush1.msra.mxu0 0.0
        %660 = vmatprep.subr.mxu0 0.0
        %661 = vmatpush1.msra.mxu0 0.0
        %662 = vmatprep.subr.mxu0 0.0
        %663 = vmatpush1.msra.mxu0 0.0
        %664 = vmatprep.subr.mxu0 0.0
        %665 = vmatpush1.msra.mxu0 0.0
        %666 = vmatprep.subr.mxu0 0.0
        %667 = vmatpush1.msra.mxu0 0.0
        %668 = vmatprep.subr.mxu0 0.0
        %669 = vmatpush1.msra.mxu0 0.0
        %670 = vmatprep.subr.mxu0 0.0
        %671 = vmatpush1.msra.mxu0 0.0
        %672 = vmatprep.subr.mxu0 0.0
        %673 = vmatpush1.msra.mxu0 0.0
        %674 = vmatprep.subr.mxu0 0.0
        %675 = vmatpush1.msra.mxu0 0.0
        %676 = vmatprep.subr.mxu0 0.0
        %677 = vmatpush1.msra.mxu0 0.0
        %678 = vmatprep.subr.mxu0 0.0
        %679 = vmatpush1.msra.mxu0 0.0
        %680 = vmatprep.subr.mxu0 0.0
        %681 = vmatpush1.msra.mxu0 0.0
        %682 = vmatprep.subr.mxu0 0.0
        %683 = vmatpush1.msra.mxu0 0.0
        %684 = vmatprep.subr.mxu0 0.0
        %685 = vmatpush1.msra.mxu0 0.0
        %686 = vmatprep.subr.mxu0 0.0
        %687 = vmatpush1.msra.mxu0 0.0
        %688 = vmatprep.subr.mxu0 0.0
        %689 = vmatpush1.msra.mxu0 0.0
        %690 = vmatprep.subr.mxu0 0.0
        %691 = vmatpush1.msra.mxu0 0.0
        %692 = vmatprep.subr.mxu0 0.0
        %693 = vmatpush1.msra.mxu0 0.0
        %694 = vmatprep.subr.mxu0 0.0
        %695 = vmatpush1.msra.mxu0 0.0
        %696 = vmatprep.subr.mxu0 0.0
        %697 = vmatpush1.msra.mxu0 0.0
        %698 = vmatprep.subr.mxu0 0.0
        %699 = vmatpush1.msra.mxu0 0.0
        %700 = vmatprep.subr.mxu0 0.0
        %701 = vmatpush1.msra.mxu0 0.0
        %702 = vmatprep.subr.mxu0 0.0
        %703 = vmatpush1.msra.mxu0 0.0
        %704 = vmatprep.subr.mxu0 0.0
        %705 = vmatpush1.msra.mxu0 0.0
        %706 = vmatprep.subr.mxu0 0.0
        %707 = vmatpush1.msra.mxu0 0.0
        %708 = vmatprep.subr.mxu0 0.0
        %709 = vmatpush1.msra.mxu0 0.0
        %710 = vmatprep.mubr.f32.mxu0 0.0
        %711 = vmatmul.mubr.f32.gmra.mrb[0].mxu0 %v641
        %v712 = vpop.f32.mrb[0].mxu0
        %v713 = vadd.f32 0.0, %v712
        %v714 = vpop.f32.mrb[0].mxu0
        %715 = vmatprep.mubr.f32.mxu0 0.0
        %716 = vmatmul.mubr.f32.gmra.mrb[0].mxu0 %v644
        %v717 = vpop.f32.mrb[0].mxu0
        %v718 = vadd.f32 0.0, %v717
        %v719 = vpop.f32.mrb[0].mxu0
        %720 = vdwg.mxu0
        %721 = vrot.lane.b32.xlu0 %v444, 96
        %v722 = vpop.permute.xlu0 %721
        %723 = vrot.lane.b32.xlu0 %v450, 96
        %v724 = vpop.permute.xlu0 %723
        %725 = vrot.lane.b32.xlu0 %v446, 96
        %v726 = vpop.permute.xlu0 %725
        %727 = vrot.lane.b32.xlu0 %v452, 96
        %v728 = vpop.permute.xlu0 %727
        %v729 = vsel %vm529, %v722, 0
        %v731 = vsel %vm529, %v724, 0
        %v733 = vsel %vm529, %v726, 0
        %v735 = vsel %vm529, %v728, 0
        %737 = vmatprep.subr.mxu0 0.0
        %738 = vmatpush1.xpose.msra.mxu0 %v733
        %739 = vmatprep.subr.mxu0 0.0
        %740 = vmatpush1.xpose.msra.mxu0 %v735
        %741 = vmatprep.subr.mxu0 0.0
        %742 = vmatpush1.xpose.msra.mxu0 0.0
        %743 = vmatprep.subr.mxu0 0.0
        %744 = vmatpush1.xpose.msra.mxu0 0.0
        %745 = vmatprep.subr.mxu0 0.0
        %746 = vmatpush1.xpose.msra.mxu0 0.0
        %747 = vmatprep.subr.mxu0 0.0
        %748 = vmatpush1.xpose.msra.mxu0 0.0
        %749 = vmatprep.subr.mxu0 0.0
        %750 = vmatpush1.xpose.msra.mxu0 0.0
        %751 = vmatprep.subr.mxu0 0.0
        %752 = vmatpush1.xpose.msra.mxu0 0.0
        %753 = vmatprep.subr.mxu0 0.0
        %754 = vmatpush1.xpose.msra.mxu0 0.0
        %755 = vmatprep.subr.mxu0 0.0
        %756 = vmatpush1.xpose.msra.mxu0 0.0
        %757 = vmatprep.subr.mxu0 0.0
        %758 = vmatpush1.xpose.msra.mxu0 0.0
        %759 = vmatprep.subr.mxu0 0.0
        %760 = vmatpush1.xpose.msra.mxu0 0.0
        %761 = vmatprep.subr.mxu0 0.0
        %762 = vmatpush1.xpose.msra.mxu0 0.0
        %763 = vmatprep.subr.mxu0 0.0
        %764 = vmatpush1.xpose.msra.mxu0 0.0
        %765 = vmatprep.subr.mxu0 0.0
        %766 = vmatpush1.xpose.msra.mxu0 0.0
        %767 = vmatprep.subr.mxu0 0.0
        %768 = vmatpush1.xpose.msra.mxu0 0.0
        %769 = vmatprep.subr.mxu0 0.0
        %770 = vmatpush1.xpose.msra.mxu0 0.0
        %771 = vmatprep.subr.mxu0 0.0
        %772 = vmatpush1.xpose.msra.mxu0 0.0
        %773 = vmatprep.subr.mxu0 0.0
        %774 = vmatpush1.xpose.msra.mxu0 0.0
        %775 = vmatprep.subr.mxu0 0.0
        %776 = vmatpush1.xpose.msra.mxu0 0.0
        %777 = vmatprep.subr.mxu0 0.0
        %778 = vmatpush1.xpose.msra.mxu0 0.0
        %779 = vmatprep.subr.mxu0 0.0
        %780 = vmatpush1.xpose.msra.mxu0 0.0
        %781 = vmatprep.subr.mxu0 0.0
        %782 = vmatpush1.xpose.msra.mxu0 0.0
        %783 = vmatprep.subr.mxu0 0.0
        %784 = vmatpush1.xpose.msra.mxu0 0.0
        %785 = vmatprep.subr.mxu0 0.0
        %786 = vmatpush1.xpose.msra.mxu0 0.0
        %787 = vmatprep.subr.mxu0 0.0
        %788 = vmatpush1.xpose.msra.mxu0 0.0
        %789 = vmatprep.subr.mxu0 0.0
        %790 = vmatpush1.xpose.msra.mxu0 0.0
        %791 = vmatprep.subr.mxu0 0.0
        %792 = vmatpush1.xpose.msra.mxu0 0.0
        %793 = vmatprep.subr.mxu0 0.0
        %794 = vmatpush1.xpose.msra.mxu0 0.0
        %795 = vmatprep.subr.mxu0 0.0
        %796 = vmatpush1.xpose.msra.mxu0 0.0
        %797 = vmatprep.subr.mxu0 0.0
        %798 = vmatpush1.xpose.msra.mxu0 0.0
        %799 = vmatprep.subr.mxu0 0.0
        %800 = vmatpush1.xpose.msra.mxu0 0.0
        %801 = vmatprep.mubr.f32.mxu0 0.0
        %802 = vmatmul.mubr.f32.gmra.mrb[0].mxu0 %v729
        %v803 = vpop.f32.mrb[0].mxu0
        %v804 = vadd.f32 0.0, %v803
        %v805 = vpop.f32.mrb[0].mxu0
        %806 = vmatprep.mubr.f32.mxu0 0.0
        %807 = vmatmul.mubr.f32.gmra.mrb[0].mxu0 %v731
        %v808 = vpop.f32.mrb[0].mxu0
        %v809 = vadd.f32 0.0, %v808
        %v810 = vpop.f32.mrb[0].mxu0
        %811 = vdwg.mxu0
        %v812 = vsel %vm617, %v804, -inf
        %813 = vmax.xlane.f32.xlu0 %v812
        %v814 = vpop.xlane.xlu0 %813
        %v815 = vsel %vm617, %v809, -inf
        %816 = vmax.xlane.f32.xlu0 %v815
        %v817 = vpop.xlane.xlu0 %816
        %v818 = vsub.f32 %v804, %v814
        %v819 = vsub.f32 %v809, %v817
        %v820 = vmul.f32 %v818, 1.442695
        %v821 = vpow.pop %v820
        %v822 = vmul.f32 %v819, 1.442695
        %v823 = vpow.pop %v822
        %v824 = vsel %vm617, %v821, 0.0
        %825 = vadd.xlane.f32.xlu0 %v824
        %v826 = vpop.xlane.xlu0 %825
        %v827 = vsel %vm617, %v823, 0.0
        %828 = vadd.xlane.f32.xlu0 %v827
        %v829 = vpop.xlane.xlu0 %828
        %v830 = vrcp.pop %v826
        %v831 = vrcp.pop %v829
        %v832 = vmul.f32 %v821, %v830
        %v833 = vmul.f32 %v823, %v831
        %836 = vrot.lane.b32.xlu0 %v521, 96
        %v837 = vpop.permute.xlu0 %836
        %838 = vrot.lane.b32.xlu0 %v526, 96
        %v839 = vpop.permute.xlu0 %838
        %v843 = vsel %vm617, %v832, 0
        %v846 = vsel %vm617, %v833, 0
        %848 = vmatprep.subr.mxu0 0.0
        %849 = vmatpush1.msra.mxu0 %v837
        %850 = vmatprep.subr.mxu0 0.0
        %851 = vmatpush1.msra.mxu0 %v839
        %852 = vmatprep.subr.mxu0 0.0
        %853 = vmatpush1.msra.mxu0 0.0
        %854 = vmatprep.subr.mxu0 0.0
        %855 = vmatpush1.msra.mxu0 0.0
        %856 = vmatprep.subr.mxu0 0.0
        %857 = vmatpush1.msra.mxu0 0.0
        %858 = vmatprep.subr.mxu0 0.0
        %859 = vmatpush1.msra.mxu0 0.0
        %860 = vmatprep.subr.mxu0 0.0
        %861 = vmatpush1.msra.mxu0 0.0
        %862 = vmatprep.subr.mxu0 0.0
        %863 = vmatpush1.msra.mxu0 0.0
        %864 = vmatprep.subr.mxu0 0.0
        %865 = vmatpush1.msra.mxu0 0.0
        %866 = vmatprep.subr.mxu0 0.0
        %867 = vmatpush1.msra.mxu0 0.0
        %868 = vmatprep.subr.mxu0 0.0
        %869 = vmatpush1.msra.mxu0 0.0
        %870 = vmatprep.subr.mxu0 0.0
        %871 = vmatpush1.msra.mxu0 0.0
        %872 = vmatprep.subr.mxu0 0.0
        %873 = vmatpush1.msra.mxu0 0.0
        %874 = vmatprep.subr.mxu0 0.0
        %875 = vmatpush1.msra.mxu0 0.0
        %876 = vmatprep.subr.mxu0 0.0
        %877 = vmatpush1.msra.mxu0 0.0
        %878 = vmatprep.subr.mxu0 0.0
        %879 = vmatpush1.msra.mxu0 0.0
        %880 = vmatprep.subr.mxu0 0.0
        %881 = vmatpush1.msra.mxu0 0.0
        %882 = vmatprep.subr.mxu0 0.0
        %883 = vmatpush1.msra.mxu0 0.0
        %884 = vmatprep.subr.mxu0 0.0
        %885 = vmatpush1.msra.mxu0 0.0
        %886 = vmatprep.subr.mxu0 0.0
        %887 = vmatpush1.msra.mxu0 0.0
        %888 = vmatprep.subr.mxu0 0.0
        %889 = vmatpush1.msra.mxu0 0.0
        %890 = vmatprep.subr.mxu0 0.0
        %891 = vmatpush1.msra.mxu0 0.0
        %892 = vmatprep.subr.mxu0 0.0
        %893 = vmatpush1.msra.mxu0 0.0
        %894 = vmatprep.subr.mxu0 0.0
        %895 = vmatpush1.msra.mxu0 0.0
        %896 = vmatprep.subr.mxu0 0.0
        %897 = vmatpush1.msra.mxu0 0.0
        %898 = vmatprep.subr.mxu0 0.0
        %899 = vmatpush1.msra.mxu0 0.0
        %900 = vmatprep.subr.mxu0 0.0
        %901 = vmatpush1.msra.mxu0 0.0
        %902 = vmatprep.subr.mxu0 0.0
        %903 = vmatpush1.msra.mxu0 0.0
        %904 = vmatprep.subr.mxu0 0.0
        %905 = vmatpush1.msra.mxu0 0.0
        %906 = vmatprep.subr.mxu0 0.0
        %907 = vmatpush1.msra.mxu0 0.0
        %908 = vmatprep.subr.mxu0 0.0
        %909 = vmatpush1.msra.mxu0 0.0
        %910 = vmatprep.subr.mxu0 0.0
        %911 = vmatpush1.msra.mxu0 0.0
        %912 = vmatprep.mubr.f32.mxu0 0.0
        %913 = vmatmul.mubr.f32.gmra.mrb[0].mxu0 %v843
        %v914 = vpop.f32.mrb[0].mxu0
        %v915 = vadd.f32 0.0, %v914
        %v916 = vpop.f32.mrb[0].mxu0
        %917 = vmatprep.mubr.f32.mxu0 0.0
        %918 = vmatmul.mubr.f32.gmra.mrb[0].mxu0 %v846
        %v919 = vpop.f32.mrb[0].mxu0
        %v920 = vadd.f32 0.0, %v919
        %v921 = vpop.f32.mrb[0].mxu0
        %922 = vdwg.mxu0
        %923 = vrot.lane.b32.xlu0 %v444, 64
        %v924 = vpop.permute.xlu0 %923
        %925 = vrot.lane.b32.xlu0 %v450, 64
        %v926 = vpop.permute.xlu0 %925
        %927 = vrot.lane.b32.xlu0 %v446, 64
        %v928 = vpop.permute.xlu0 %927
        %929 = vrot.lane.b32.xlu0 %v452, 64
        %v930 = vpop.permute.xlu0 %929
        %v931 = vsel %vm529, %v924, 0
        %v933 = vsel %vm529, %v926, 0
        %v935 = vsel %vm529, %v928, 0
        %v937 = vsel %vm529, %v930, 0
        %939 = vmatprep.subr.mxu0 0.0
        %940 = vmatpush1.xpose.msra.mxu0 %v935
        %941 = vmatprep.subr.mxu0 0.0
        %942 = vmatpush1.xpose.msra.mxu0 %v937
        %943 = vmatprep.subr.mxu0 0.0
        %944 = vmatpush1.xpose.msra.mxu0 0.0
        %945 = vmatprep.subr.mxu0 0.0
        %946 = vmatpush1.xpose.msra.mxu0 0.0
        %947 = vmatprep.subr.mxu0 0.0
        %948 = vmatpush1.xpose.msra.mxu0 0.0
        %949 = vmatprep.subr.mxu0 0.0
        %950 = vmatpush1.xpose.msra.mxu0 0.0
        %951 = vmatprep.subr.mxu0 0.0
        %952 = vmatpush1.xpose.msra.mxu0 0.0
        %953 = vmatprep.subr.mxu0 0.0
        %954 = vmatpush1.xpose.msra.mxu0 0.0
        %955 = vmatprep.subr.mxu0 0.0
        %956 = vmatpush1.xpose.msra.mxu0 0.0
        %957 = vmatprep.subr.mxu0 0.0
        %958 = vmatpush1.xpose.msra.mxu0 0.0
        %959 = vmatprep.subr.mxu0 0.0
        %960 = vmatpush1.xpose.msra.mxu0 0.0
        %961 = vmatprep.subr.mxu0 0.0
        %962 = vmatpush1.xpose.msra.mxu0 0.0
        %963 = vmatprep.subr.mxu0 0.0
        %964 = vmatpush1.xpose.msra.mxu0 0.0
        %965 = vmatprep.subr.mxu0 0.0
        %966 = vmatpush1.xpose.msra.mxu0 0.0
        %967 = vmatprep.subr.mxu0 0.0
        %968 = vmatpush1.xpose.msra.mxu0 0.0
        %969 = vmatprep.subr.mxu0 0.0
        %970 = vmatpush1.xpose.msra.mxu0 0.0
        %971 = vmatprep.subr.mxu0 0.0
        %972 = vmatpush1.xpose.msra.mxu0 0.0
        %973 = vmatprep.subr.mxu0 0.0
        %974 = vmatpush1.xpose.msra.mxu0 0.0
        %975 = vmatprep.subr.mxu0 0.0
        %976 = vmatpush1.xpose.msra.mxu0 0.0
        %977 = vmatprep.subr.mxu0 0.0
        %978 = vmatpush1.xpose.msra.mxu0 0.0
        %979 = vmatprep.subr.mxu0 0.0
        %980 = vmatpush1.xpose.msra.mxu0 0.0
        %981 = vmatprep.subr.mxu0 0.0
        %982 = vmatpush1.xpose.msra.mxu0 0.0
        %983 = vmatprep.subr.mxu0 0.0
        %984 = vmatpush1.xpose.msra.mxu0 0.0
        %985 = vmatprep.subr.mxu0 0.0
        %986 = vmatpush1.xpose.msra.mxu0 0.0
        %987 = vmatprep.subr.mxu0 0.0
        %988 = vmatpush1.xpose.msra.mxu0 0.0
        %989 = vmatprep.subr.mxu0 0.0
        %990 = vmatpush1.xpose.msra.mxu0 0.0
        %991 = vmatprep.subr.mxu0 0.0
        %992 = vmatpush1.xpose.msra.mxu0 0.0
        %993 = vmatprep.subr.mxu0 0.0
        %994 = vmatpush1.xpose.msra.mxu0 0.0
        %995 = vmatprep.subr.mxu0 0.0
        %996 = vmatpush1.xpose.msra.mxu0 0.0
        %997 = vmatprep.subr.mxu0 0.0
        %998 = vmatpush1.xpose.msra.mxu0 0.0
        %999 = vmatprep.subr.mxu0 0.0
        %1000 = vmatpush1.xpose.msra.mxu0 0.0
        %1001 = vmatprep.subr.mxu0 0.0
        %1002 = vmatpush1.xpose.msra.mxu0 0.0
        %1003 = vmatprep.mubr.f32.mxu0 0.0
        %1004 = vmatmul.mubr.f32.gmra.mrb[0].mxu0 %v931
        %v1005 = vpop.f32.mrb[0].mxu0
        %v1006 = vadd.f32 0.0, %v1005
        %v1007 = vpop.f32.mrb[0].mxu0
        %1008 = vmatprep.mubr.f32.mxu0 0.0
        %1009 = vmatmul.mubr.f32.gmra.mrb[0].mxu0 %v933
        %v1010 = vpop.f32.mrb[0].mxu0
        %v1011 = vadd.f32 0.0, %v1010
        %v1012 = vpop.f32.mrb[0].mxu0
        %1013 = vdwg.mxu0
        %v1014 = vsel %vm617, %v1006, -inf
        %1015 = vmax.xlane.f32.xlu0 %v1014
        %v1016 = vpop.xlane.xlu0 %1015
        %v1017 = vsel %vm617, %v1011, -inf
        %1018 = vmax.xlane.f32.xlu0 %v1017
        %v1019 = vpop.xlane.xlu0 %1018
        %v1020 = vsub.f32 %v1006, %v1016
        %v1021 = vsub.f32 %v1011, %v1019
        %v1022 = vmul.f32 %v1020, 1.442695
        %v1023 = vpow.pop %v1022
        %v1024 = vmul.f32 %v1021, 1.442695
        %v1025 = vpow.pop %v1024
        %v1026 = vsel %vm617, %v1023, 0.0
        %1027 = vadd.xlane.f32.xlu0 %v1026
        %v1028 = vpop.xlane.xlu0 %1027
        %v1029 = vsel %vm617, %v1025, 0.0
        %1030 = vadd.xlane.f32.xlu0 %v1029
        %v1031 = vpop.xlane.xlu0 %1030
        %v1032 = vrcp.pop %v1028
        %v1033 = vrcp.pop %v1031
        %v1034 = vmul.f32 %v1023, %v1032
        %v1035 = vmul.f32 %v1025, %v1033
        %1036 = vrot.lane.b32.xlu0 %v521, 64
        %v1037 = vpop.permute.xlu0 %1036
        %1038 = vrot.lane.b32.xlu0 %v526, 64
        %v1039 = vpop.permute.xlu0 %1038
        %v1043 = vsel %vm617, %v1034, 0
        %v1046 = vsel %vm617, %v1035, 0
        %1048 = vmatprep.subr.mxu0 0.0
        %1049 = vmatpush1.msra.mxu0 %v1037
        %1050 = vmatprep.subr.mxu0 0.0
        %1051 = vmatpush1.msra.mxu0 %v1039
        %1052 = vmatprep.subr.mxu0 0.0
        %1053 = vmatpush1.msra.mxu0 0.0
        %1054 = vmatprep.subr.mxu0 0.0
        %1055 = vmatpush1.msra.mxu0 0.0
        %1056 = vmatprep.subr.mxu0 0.0
        %1057 = vmatpush1.msra.mxu0 0.0
        %1058 = vmatprep.subr.mxu0 0.0
        %1059 = vmatpush1.msra.mxu0 0.0
        %1060 = vmatprep.subr.mxu0 0.0
        %1061 = vmatpush1.msra.mxu0 0.0
        %1062 = vmatprep.subr.mxu0 0.0
        %1063 = vmatpush1.msra.mxu0 0.0
        %1064 = vmatprep.subr.mxu0 0.0
        %1065 = vmatpush1.msra.mxu0 0.0
        %1066 = vmatprep.subr.mxu0 0.0
        %1067 = vmatpush1.msra.mxu0 0.0
        %1068 = vmatprep.subr.mxu0 0.0
        %1069 = vmatpush1.msra.mxu0 0.0
        %1070 = vmatprep.subr.mxu0 0.0
        %1071 = vmatpush1.msra.mxu0 0.0
        %1072 = vmatprep.subr.mxu0 0.0
        %1073 = vmatpush1.msra.mxu0 0.0
        %1074 = vmatprep.subr.mxu0 0.0
        %1075 = vmatpush1.msra.mxu0 0.0
        %1076 = vmatprep.subr.mxu0 0.0
        %1077 = vmatpush1.msra.mxu0 0.0
        %1078 = vmatprep.subr.mxu0 0.0
        %1079 = vmatpush1.msra.mxu0 0.0
        %1080 = vmatprep.subr.mxu0 0.0
        %1081 = vmatpush1.msra.mxu0 0.0
        %1082 = vmatprep.subr.mxu0 0.0
        %1083 = vmatpush1.msra.mxu0 0.0
        %1084 = vmatprep.subr.mxu0 0.0
        %1085 = vmatpush1.msra.mxu0 0.0
        %1086 = vmatprep.subr.mxu0 0.0
        %1087 = vmatpush1.msra.mxu0 0.0
        %1088 = vmatprep.subr.mxu0 0.0
        %1089 = vmatpush1.msra.mxu0 0.0
        %1090 = vmatprep.subr.mxu0 0.0
        %1091 = vmatpush1.msra.mxu0 0.0
        %1092 = vmatprep.subr.mxu0 0.0
        %1093 = vmatpush1.msra.mxu0 0.0
        %1094 = vmatprep.subr.mxu0 0.0
        %1095 = vmatpush1.msra.mxu0 0.0
        %1096 = vmatprep.subr.mxu0 0.0
        %1097 = vmatpush1.msra.mxu0 0.0
        %1098 = vmatprep.subr.mxu0 0.0
        %1099 = vmatpush1.msra.mxu0 0.0
        %1100 = vmatprep.subr.mxu0 0.0
        %1101 = vmatpush1.msra.mxu0 0.0
        %1102 = vmatprep.subr.mxu0 0.0
        %1103 = vmatpush1.msra.mxu0 0.0
        %1104 = vmatprep.subr.mxu0 0.0
        %1105 = vmatpush1.msra.mxu0 0.0
        %1106 = vmatprep.subr.mxu0 0.0
        %1107 = vmatpush1.msra.mxu0 0.0
        %1108 = vmatprep.subr.mxu0 0.0
        %1109 = vmatpush1.msra.mxu0 0.0
        %1110 = vmatprep.subr.mxu0 0.0
        %1111 = vmatpush1.msra.mxu0 0.0
        %1112 = vmatprep.mubr.f32.mxu0 0.0
        %1113 = vmatmul.mubr.f32.gmra.mrb[0].mxu0 %v1043
        %v1114 = vpop.f32.mrb[0].mxu0
        %v1115 = vadd.f32 0.0, %v1114
        %v1116 = vpop.f32.mrb[0].mxu0
        %1117 = vmatprep.mubr.f32.mxu0 0.0
        %1118 = vmatmul.mubr.f32.gmra.mrb[0].mxu0 %v1046
        %v1119 = vpop.f32.mrb[0].mxu0
        %v1120 = vadd.f32 0.0, %v1119
        %v1121 = vpop.f32.mrb[0].mxu0
        %1122 = vdwg.mxu0
        %1123 = vrot.lane.b32.xlu0 %v444, 32
        %v1124 = vpop.permute.xlu0 %1123
        %1125 = vrot.lane.b32.xlu0 %v450, 32
        %v1126 = vpop.permute.xlu0 %1125
        %1127 = vrot.lane.b32.xlu0 %v446, 32
        %v1128 = vpop.permute.xlu0 %1127
        %1129 = vrot.lane.b32.xlu0 %v452, 32
        %v1130 = vpop.permute.xlu0 %1129
        %v1131 = vsel %vm529, %v1124, 0
        %v1133 = vsel %vm529, %v1126, 0
        %v1135 = vsel %vm529, %v1128, 0
        %v1137 = vsel %vm529, %v1130, 0
        %1139 = vmatprep.subr.mxu0 0.0
        %1140 = vmatpush1.xpose.msra.mxu0 %v1135
        %1141 = vmatprep.subr.mxu0 0.0
        %1142 = vmatpush1.xpose.msra.mxu0 %v1137
        %1143 = vmatprep.subr.mxu0 0.0
        %1144 = vmatpush1.xpose.msra.mxu0 0.0
        %1145 = vmatprep.subr.mxu0 0.0
        %1146 = vmatpush1.xpose.msra.mxu0 0.0
        %1147 = vmatprep.subr.mxu0 0.0
        %1148 = vmatpush1.xpose.msra.mxu0 0.0
        %1149 = vmatprep.subr.mxu0 0.0
        %1150 = vmatpush1.xpose.msra.mxu0 0.0
        %1151 = vmatprep.subr.mxu0 0.0
        %1152 = vmatpush1.xpose.msra.mxu0 0.0
        %1153 = vmatprep.subr.mxu0 0.0
        %1154 = vmatpush1.xpose.msra.mxu0 0.0
        %1155 = vmatprep.subr.mxu0 0.0
        %1156 = vmatpush1.xpose.msra.mxu0 0.0
        %1157 = vmatprep.subr.mxu0 0.0
        %1158 = vmatpush1.xpose.msra.mxu0 0.0
        %1159 = vmatprep.subr.mxu0 0.0
        %1160 = vmatpush1.xpose.msra.mxu0 0.0
        %1161 = vmatprep.subr.mxu0 0.0
        %1162 = vmatpush1.xpose.msra.mxu0 0.0
        %1163 = vmatprep.subr.mxu0 0.0
        %1164 = vmatpush1.xpose.msra.mxu0 0.0
        %1165 = vmatprep.subr.mxu0 0.0
        %1166 = vmatpush1.xpose.msra.mxu0 0.0
        %1167 = vmatprep.subr.mxu0 0.0
        %1168 = vmatpush1.xpose.msra.mxu0 0.0
        %1169 = vmatprep.subr.mxu0 0.0
        %1170 = vmatpush1.xpose.msra.mxu0 0.0
        %1171 = vmatprep.subr.mxu0 0.0
        %1172 = vmatpush1.xpose.msra.mxu0 0.0
        %1173 = vmatprep.subr.mxu0 0.0
        %1174 = vmatpush1.xpose.msra.mxu0 0.0
        %1175 = vmatprep.subr.mxu0 0.0
        %1176 = vmatpush1.xpose.msra.mxu0 0.0
        %1177 = vmatprep.subr.mxu0 0.0
        %1178 = vmatpush1.xpose.msra.mxu0 0.0
        %1179 = vmatprep.subr.mxu0 0.0
        %1180 = vmatpush1.xpose.msra.mxu0 0.0
        %1181 = vmatprep.subr.mxu0 0.0
        %1182 = vmatpush1.xpose.msra.mxu0 0.0
        %1183 = vmatprep.subr.mxu0 0.0
        %1184 = vmatpush1.xpose.msra.mxu0 0.0
        %1185 = vmatprep.subr.mxu0 0.0
        %1186 = vmatpush1.xpose.msra.mxu0 0.0
        %1187 = vmatprep.subr.mxu0 0.0
        %1188 = vmatpush1.xpose.msra.mxu0 0.0
        %1189 = vmatprep.subr.mxu0 0.0
        %1190 = vmatpush1.xpose.msra.mxu0 0.0
        %1191 = vmatprep.subr.mxu0 0.0
        %1192 = vmatpush1.xpose.msra.mxu0 0.0
        %1193 = vmatprep.subr.mxu0 0.0
        %1194 = vmatpush1.xpose.msra.mxu0 0.0
        %1195 = vmatprep.subr.mxu0 0.0
        %1196 = vmatpush1.xpose.msra.mxu0 0.0
        %1197 = vmatprep.subr.mxu0 0.0
        %1198 = vmatpush1.xpose.msra.mxu0 0.0
        %1199 = vmatprep.subr.mxu0 0.0
        %1200 = vmatpush1.xpose.msra.mxu0 0.0
        %1201 = vmatprep.subr.mxu0 0.0
        %1202 = vmatpush1.xpose.msra.mxu0 0.0
        %1203 = vmatprep.mubr.f32.mxu0 0.0
        %1204 = vmatmul.mubr.f32.gmra.mrb[0].mxu0 %v1131
        %v1205 = vpop.f32.mrb[0].mxu0
        %v1206 = vadd.f32 0.0, %v1205
        %v1207 = vpop.f32.mrb[0].mxu0
        %1208 = vmatprep.mubr.f32.mxu0 0.0
        %1209 = vmatmul.mubr.f32.gmra.mrb[0].mxu0 %v1133
        %v1210 = vpop.f32.mrb[0].mxu0
        %v1211 = vadd.f32 0.0, %v1210
        %v1212 = vpop.f32.mrb[0].mxu0
        %1213 = vdwg.mxu0
        %v1214 = vsel %vm617, %v1206, -inf
        %1215 = vmax.xlane.f32.xlu0 %v1214
        %v1216 = vpop.xlane.xlu0 %1215
        %v1217 = vsel %vm617, %v1211, -inf
        %1218 = vmax.xlane.f32.xlu0 %v1217
        %v1219 = vpop.xlane.xlu0 %1218
        %v1220 = vsub.f32 %v1206, %v1216
        %v1221 = vsub.f32 %v1211, %v1219
        %v1222 = vmul.f32 %v1220, 1.442695
        %v1223 = vpow.pop %v1222
        %v1224 = vmul.f32 %v1221, 1.442695
        %v1225 = vpow.pop %v1224
        %v1226 = vsel %vm617, %v1223, 0.0
        %1227 = vadd.xlane.f32.xlu0 %v1226
        %v1228 = vpop.xlane.xlu0 %1227
        %v1229 = vsel %vm617, %v1225, 0.0
        %1230 = vadd.xlane.f32.xlu0 %v1229
        %v1231 = vpop.xlane.xlu0 %1230
        %v1232 = vrcp.pop %v1228
        %v1233 = vrcp.pop %v1231
        %v1234 = vmul.f32 %v1223, %v1232
        %v1235 = vmul.f32 %v1225, %v1233
        %1236 = vrot.lane.b32.xlu0 %v521, 32
        %v1237 = vpop.permute.xlu0 %1236
        %1238 = vrot.lane.b32.xlu0 %v526, 32
        %v1239 = vpop.permute.xlu0 %1238
        %v1243 = vsel %vm617, %v1234, 0
        %v1246 = vsel %vm617, %v1235, 0
        %1248 = vmatprep.subr.mxu0 0.0
        %1249 = vmatpush1.msra.mxu0 %v1237
        %1250 = vmatprep.subr.mxu0 0.0
        %1251 = vmatpush1.msra.mxu0 %v1239
        %1252 = vmatprep.subr.mxu0 0.0
        %1253 = vmatpush1.msra.mxu0 0.0
        %1254 = vmatprep.subr.mxu0 0.0
        %1255 = vmatpush1.msra.mxu0 0.0
        %1256 = vmatprep.subr.mxu0 0.0
        %1257 = vmatpush1.msra.mxu0 0.0
        %1258 = vmatprep.subr.mxu0 0.0
        %1259 = vmatpush1.msra.mxu0 0.0
        %1260 = vmatprep.subr.mxu0 0.0
        %1261 = vmatpush1.msra.mxu0 0.0
        %1262 = vmatprep.subr.mxu0 0.0
        %1263 = vmatpush1.msra.mxu0 0.0
        %1264 = vmatprep.subr.mxu0 0.0
        %1265 = vmatpush1.msra.mxu0 0.0
        %1266 = vmatprep.subr.mxu0 0.0
        %1267 = vmatpush1.msra.mxu0 0.0
        %1268 = vmatprep.subr.mxu0 0.0
        %1269 = vmatpush1.msra.mxu0 0.0
        %1270 = vmatprep.subr.mxu0 0.0
        %1271 = vmatpush1.msra.mxu0 0.0
        %1272 = vmatprep.subr.mxu0 0.0
        %1273 = vmatpush1.msra.mxu0 0.0
        %1274 = vmatprep.subr.mxu0 0.0
        %1275 = vmatpush1.msra.mxu0 0.0
        %1276 = vmatprep.subr.mxu0 0.0
        %1277 = vmatpush1.msra.mxu0 0.0
        %1278 = vmatprep.subr.mxu0 0.0
        %1279 = vmatpush1.msra.mxu0 0.0
        %1280 = vmatprep.subr.mxu0 0.0
        %1281 = vmatpush1.msra.mxu0 0.0
        %1282 = vmatprep.subr.mxu0 0.0
        %1283 = vmatpush1.msra.mxu0 0.0
        %1284 = vmatprep.subr.mxu0 0.0
        %1285 = vmatpush1.msra.mxu0 0.0
        %1286 = vmatprep.subr.mxu0 0.0
        %1287 = vmatpush1.msra.mxu0 0.0
        %1288 = vmatprep.subr.mxu0 0.0
        %1289 = vmatpush1.msra.mxu0 0.0
        %1290 = vmatprep.subr.mxu0 0.0
        %1291 = vmatpush1.msra.mxu0 0.0
        %1292 = vmatprep.subr.mxu0 0.0
        %1293 = vmatpush1.msra.mxu0 0.0
        %1294 = vmatprep.subr.mxu0 0.0
        %1295 = vmatpush1.msra.mxu0 0.0
        %1296 = vmatprep.subr.mxu0 0.0
        %1297 = vmatpush1.msra.mxu0 0.0
        %1298 = vmatprep.subr.mxu0 0.0
        %1299 = vmatpush1.msra.mxu0 0.0
        %1300 = vmatprep.subr.mxu0 0.0
        %1301 = vmatpush1.msra.mxu0 0.0
        %1302 = vmatprep.subr.mxu0 0.0
        %1303 = vmatpush1.msra.mxu0 0.0
        %1304 = vmatprep.subr.mxu0 0.0
        %1305 = vmatpush1.msra.mxu0 0.0
        %1306 = vmatprep.subr.mxu0 0.0
        %1307 = vmatpush1.msra.mxu0 0.0
        %1308 = vmatprep.subr.mxu0 0.0
        %1309 = vmatpush1.msra.mxu0 0.0
        %1310 = vmatprep.subr.mxu0 0.0
        %1311 = vmatpush1.msra.mxu0 0.0
        %1312 = vmatprep.mubr.f32.mxu0 0.0
        %1313 = vmatmul.mubr.f32.gmra.mrb[0].mxu0 %v1243
        %v1314 = vpop.f32.mrb[0].mxu0
        %v1315 = vadd.f32 0.0, %v1314
        %v1316 = vpop.f32.mrb[0].mxu0
        %1317 = vmatprep.mubr.f32.mxu0 0.0
        %1318 = vmatmul.mubr.f32.gmra.mrb[0].mxu0 %v1246
        %v1319 = vpop.f32.mrb[0].mxu0
        %v1320 = vadd.f32 0.0, %v1319
        %v1321 = vpop.f32.mrb[0].mxu0
        %1322 = vdwg.mxu0
        %1325 = vrot.lane.b32.xlu0 %v915, 32
        %v1326 = vpop.permute.xlu0 %1325
        %1327 = vrot.lane.b32.xlu0 %v920, 32
        %v1328 = vpop.permute.xlu0 %1327
        %1333 = vrot.lane.b32.xlu0 %v1115, 64
        %v1334 = vpop.permute.xlu0 %1333
        %1335 = vrot.lane.b32.xlu0 %v1120, 64
        %v1336 = vpop.permute.xlu0 %1335
        %1341 = vrot.lane.b32.xlu0 %v1315, 96
        %v1342 = vpop.permute.xlu0 %1341
        %1343 = vrot.lane.b32.xlu0 %v1320, 96
        %v1344 = vpop.permute.xlu0 %1343
        %v1347 = vsel %vm529, %v713, %v1326
        %v1348 = vsel %vm529, %v718, %v1328
        %vm1349 = vcmask 523264
        %v1350 = vsel %vm1349, %v1347, %v1334
        %v1351 = vsel %vm1349, %v1348, %v1336
        %vm1352 = vcmask 785408
        %v1353 = vsel %vm1352, %v1350, %v1342
        %v1354 = vsel %vm1352, %v1351, %v1344
        %1355 = vst [vmem:[%s302] sm:$0xff] %v1353
        %1356 = vst [vmem:[%s302 + $0x8] sm:$0xff] %v1354
        %v1357 = vld [vmem:[#allocation7] sm:$0xff]
        %v1358 = vld [vmem:[#allocation7 + $0x8] sm:$0xff]
        %v1359 = vld [vmem:[#allocation7 + $0x10] sm:$0xff]
        %v1360 = vld [vmem:[#allocation7 + $0x18] sm:$0xff]
        %v1361 = vld [vmem:[#allocation7 + $0x20] sm:$0xff]
        %v1362 = vld [vmem:[#allocation7 + $0x28] sm:$0xff]
        %v1363 = vld [vmem:[#allocation7 + $0x30] sm:$0xff]
        %v1364 = vld [vmem:[#allocation7 + $0x38] sm:$0xff]
        %v1365 = vld [vmem:[#allocation7 + $0x40] sm:$0xff]
        %v1366 = vld [vmem:[#allocation7 + $0x48] sm:$0xff]
        %v1367 = vld [vmem:[#allocation7 + $0x50] sm:$0xff]
        %v1368 = vld [vmem:[#allocation7 + $0x58] sm:$0xff]
        %v1369 = vld [vmem:[#allocation7 + $0x60] sm:$0xff]
        %v1370 = vld [vmem:[#allocation7 + $0x68] sm:$0xff]
        %v1371 = vld [vmem:[#allocation7 + $0x70] sm:$0xff]
        %v1372 = vld [vmem:[#allocation7 + $0x78] sm:$0xff]
        %v1373 = vld [vmem:[%s4] sm:$0x1]
        %v1375 = vlaneseq
        %v1376 = vshrl.u32 %v1375, 7
        %v1377 = vsub.s32 0, %v1376
        %v1378 = vrot.slane %v1373, %v1377
        %1380 = vmatprep.subr.mxu0 0.0
        %1381 = vmatpush1.msra.mxu0 %v1357
        %1382 = vmatprep.subr.mxu0 0.0
        %1383 = vmatpush1.msra.mxu0 %v1358
        %1384 = vmatprep.subr.mxu0 0.0
        %1385 = vmatpush1.msra.mxu0 %v1359
        %1386 = vmatprep.subr.mxu0 0.0
        %1387 = vmatpush1.msra.mxu0 %v1360
        %1388 = vmatprep.subr.mxu0 0.0
        %1389 = vmatpush1.msra.mxu0 %v1361
        %1390 = vmatprep.subr.mxu0 0.0
        %1391 = vmatpush1.msra.mxu0 %v1362
        %1392 = vmatprep.subr.mxu0 0.0
        %1393 = vmatpush1.msra.mxu0 %v1363
        %1394 = vmatprep.subr.mxu0 0.0
        %1395 = vmatpush1.msra.mxu0 %v1364
        %1396 = vmatprep.subr.mxu0 0.0
        %1397 = vmatpush1.msra.mxu0 %v1365
        %1398 = vmatprep.subr.mxu0 0.0
        %1399 = vmatpush1.msra.mxu0 %v1366
        %1400 = vmatprep.subr.mxu0 0.0
        %1401 = vmatpush1.msra.mxu0 %v1367
        %1402 = vmatprep.subr.mxu0 0.0
        %1403 = vmatpush1.msra.mxu0 %v1368
        %1404 = vmatprep.subr.mxu0 0.0
        %1405 = vmatpush1.msra.mxu0 %v1369
        %1406 = vmatprep.subr.mxu0 0.0
        %1407 = vmatpush1.msra.mxu0 %v1370
        %1408 = vmatprep.subr.mxu0 0.0
        %1409 = vmatpush1.msra.mxu0 %v1371
        %1410 = vmatprep.subr.mxu0 0.0
        %1411 = vmatpush1.msra.mxu0 %v1372
        %1412 = vmatprep.subr.mxu0 0.0
        %1413 = vmatpush1.msra.mxu0 0.0
        %1414 = vmatprep.subr.mxu0 0.0
        %1415 = vmatpush1.msra.mxu0 0.0
        %1416 = vmatprep.subr.mxu0 0.0
        %1417 = vmatpush1.msra.mxu0 0.0
        %1418 = vmatprep.subr.mxu0 0.0
        %1419 = vmatpush1.msra.mxu0 0.0
        %1420 = vmatprep.subr.mxu0 0.0
        %1421 = vmatpush1.msra.mxu0 0.0
        %1422 = vmatprep.subr.mxu0 0.0
        %1423 = vmatpush1.msra.mxu0 0.0
        %1424 = vmatprep.subr.mxu0 0.0
        %1425 = vmatpush1.msra.mxu0 0.0
        %1426 = vmatprep.subr.mxu0 0.0
        %1427 = vmatpush1.msra.mxu0 0.0
        %1428 = vmatprep.subr.mxu0 0.0
        %1429 = vmatpush1.msra.mxu0 0.0
        %1430 = vmatprep.subr.mxu0 0.0
        %1431 = vmatpush1.msra.mxu0 0.0
        %1432 = vmatprep.subr.mxu0 0.0
        %1433 = vmatpush1.msra.mxu0 0.0
        %1434 = vmatprep.subr.mxu0 0.0
        %1435 = vmatpush1.msra.mxu0 0.0
        %1436 = vmatprep.subr.mxu0 0.0
        %1437 = vmatpush1.msra.mxu0 0.0
        %1438 = vmatprep.subr.mxu0 0.0
        %1439 = vmatpush1.msra.mxu0 0.0
        %1440 = vmatprep.subr.mxu0 0.0
        %1441 = vmatpush1.msra.mxu0 0.0
        %1442 = vmatprep.subr.mxu0 0.0
        %1443 = vmatpush1.msra.mxu0 0.0
        %1444 = vmatprep.mubr.f32.mxu0 0.0
        %1445 = vmatmul.mubr.f32.gmra.mrb[0].mxu0 %v310
        %v1446 = vpop.f32.mrb[0].mxu0
        %v1447 = vadd.f32 %v1378, %v1446
        %v1448 = vpop.f32.mrb[0].mxu0
        %1449 = vmatprep.mubr.f32.mxu0 0.0
        %1450 = vmatmul.mubr.f32.gmra.mrb[0].mxu0 %v311
        %v1451 = vpop.f32.mrb[0].mxu0
        %v1452 = vadd.f32 %v1378, %v1451
        %v1453 = vpop.f32.mrb[0].mxu0
        %1454 = vdwg.mxu0
        %1455 = vst [vmem:[%s309] sm:$0xff] %v1447
        %1456 = vst [vmem:[%s309 + $0x8] sm:$0xff] %v1452
        %s1457 = sand.u32 %s146, 1
        %s1458 = scalar_lea.sflag [#allocation4], %s1457
        %s1459 = sand.u32 %s146, 1
        %s1460 = smul.addr %s1459, 16
        %s1461 = scalar_lea.vmem [#allocation8], %s1460
        %s1462 = sand.u32 %s172, 1
        %s1463 = scalar_lea.sflag [#allocation10], %s1462
        %s1464 = sand.u32 %s172, 1
        %s1465 = smul.addr %s1464, 16
        %s1466 = scalar_lea.vmem [#allocation9], %s1465
        // Predicated region
        $region53: #{tpu_custom_call.1} parent=39 // pred_check
          %p1467 = pneg %p156
        $region54: #{tpu_custom_call.1} parent=39 // pred_check_branch
          %1469 = sbr.rel (%p1467) target = $region56
        $region55: #{tpu_custom_call.1} parent=39 // pred_region
          %s1471 = ssub.s32 256, 256
          %1472 = vsyncadd %s1458, %s1471
          %s1473 = smul.addr %s28, 2
          %s1474 = smul.addr %s1473, 128
          %s1475 = scalar_lea.hbm %s5, %s1474
          %s1476 = sshll.u32 %s1461, 4
          %s1477 = int_to_ptr.vmem [resolvable:$true] %s1476
          %1482 = dma.vmem_to_hbm [thread:$0]  %s1477, 256, %s1475, %s1458, 128, 128, 8
        $region56: #{tpu_custom_call.1} parent=39 // pred_fallthru
          _
        // Predicated region
        $region57: #{tpu_custom_call.1} parent=39 // pred_check
          %p1483 = pneg %p182
        $region58: #{tpu_custom_call.1} parent=39 // pred_check_branch
          %1485 = sbr.rel (%p1483) target = $region60
        $region59: #{tpu_custom_call.1} parent=39 // pred_region
          %s1487 = ssub.s32 256, 256
          %1488 = vsyncadd %s1463, %s1487
          %s1489 = smul.addr %s28, 2
          %s1490 = smul.addr %s1489, 128
          %s1491 = scalar_lea.hbm %s6, %s1490
          %s1492 = sshll.u32 %s1466, 4
          %s1493 = int_to_ptr.vmem [resolvable:$true] %s1492
          %1498 = dma.vmem_to_hbm [thread:$0]  %s1493, 256, %s1491, %s1463, 128, 128, 8
        $region60: #{tpu_custom_call.1} parent=39 // pred_fallthru
          _
      $region40: #{tpu_custom_call.1} parent=5 // pred_fallthru
        _
      %p1499 = scmp.le.s32.totalorder 2, %s23
      // Predicated region
      $region61: #{tpu_custom_call.1} parent=5 // pred_check
        %p1500 = pneg %p1499
      $region62: #{tpu_custom_call.1} parent=5 // pred_check_branch
        %1502 = sbr.rel (%p1500) target = $region64
      $region63: #{tpu_custom_call.1} parent=5 // pred_region
        %s1503 = ssub.s32 %s23, 2
        // Predicated region
        $region65: #{tpu_custom_call.1} parent=63 // pred_check
          %p1504 = pneg %p162
        $region66: #{tpu_custom_call.1} parent=63 // pred_check_branch
          %1506 = sbr.rel (%p1504) target = $region68
        $region67: #{tpu_custom_call.1} parent=63 // pred_region
          %s1507 = sand.u32 %s147, 1
          %s1508 = scalar_lea.sflag [#allocation4], %s1507
          %s1509 = sand.u32 %s147, 1
          %s1510 = smul.addr %s1509, 16
          %s1511 = scalar_lea.vmem [#allocation8], %s1510
          %1512 = dma.done %s1508, 256
        $region68: #{tpu_custom_call.1} parent=63 // pred_fallthru
          _
        // Predicated region
        $region69: #{tpu_custom_call.1} parent=63 // pred_check
          %p1513 = pneg %p188
        $region70: #{tpu_custom_call.1} parent=63 // pred_check_branch
          %1515 = sbr.rel (%p1513) target = $region72
        $region71: #{tpu_custom_call.1} parent=63 // pred_region
          %s1516 = sand.u32 %s173, 1
          %s1517 = scalar_lea.sflag [#allocation10], %s1516
          %s1518 = sand.u32 %s173, 1
          %s1519 = smul.addr %s1518, 16
          %s1520 = scalar_lea.vmem [#allocation9], %s1519
          %1521 = dma.done %s1517, 256
        $region72: #{tpu_custom_call.1} parent=63 // pred_fallthru
          _
      $region64: #{tpu_custom_call.1} parent=5 // pred_fallthru
        _
    $region6: #{tpu_custom_call.1} parent=1 // loop_footer
      %s27 = sadd.s32 1, %s23
    $region7: #{tpu_custom_call.1} parent=1 // loop_footer_branch
      %22 = sbr.rel target = $region3
    $region8: #{tpu_custom_call.1} parent=1 // loop_exit
      _
    %1522 = vsyncpa [#allocation3], 1
    %s1523 = scalar_lea.sflag [#allocation3], 1
    %1524 = vsyncpa %s1523, 1
    %1525 = vsyncpa [#allocation6], 1
    %1526 = vsyncpa [#allocation4], 1
    %s1527 = scalar_lea.sflag [#allocation4], 1
    %1528 = vsyncpa %s1527, 1
    %1529 = vsyncpa [#allocation10], 1
    %s1530 = scalar_lea.sflag [#allocation10], 1
    %1531 = vsyncpa %s1530, 1

</llo_original>
